<compile_context>
chip_gen: v7x
topology: tpu7x:2x2x1
jax: 0.10.0
libtpu: 0.0.40
codegen_flags: <defaults>
</compile_context>

<pallas_src>
import functools

import jax
import jax.numpy as jnp
from jax import lax
from jax.experimental import pallas as pl
from jax.experimental.pallas import tpu as pltpu

LANES = 128


# ----------------------------------------------------------------------------
# Parameter initialization (deterministic, synthetic — shapes follow __init__)
# ----------------------------------------------------------------------------
def init_params(key, c_in, c_out, reduction_ratio_a=16):
    r = (2 * c_in) // reduction_ratio_a
    ks = jax.random.split(key, 20)

    def nrm(k, shape, scale=0.1):
        return (jax.random.normal(k, shape) * scale).astype(jnp.float32)

    eps = 1e-5
    p = {}
    # DC (ResDoubleConv): conv3x3 + BN + ReLU, twice
    p['conv1_w'] = nrm(ks[0], (c_in, c_in, 3, 3))
    p['conv1_b'] = nrm(ks[1], (c_in,))
    g1 = 1.0 + nrm(ks[2], (c_in,)); be1 = nrm(ks[3], (c_in,))
    m1 = nrm(ks[4], (c_in,)); v1 = 1.0 + jnp.abs(nrm(ks[5], (c_in,)))
    p['bn1_s'] = g1 / jnp.sqrt(v1 + eps)
    p['bn1_t'] = be1 - m1 * p['bn1_s']
    p['conv2_w'] = nrm(ks[6], (c_in, c_in, 3, 3))
    p['conv2_b'] = nrm(ks[7], (c_in,))
    g2 = 1.0 + nrm(ks[8], (c_in,)); be2 = nrm(ks[9], (c_in,))
    m2 = nrm(ks[10], (c_in,)); v2 = 1.0 + jnp.abs(nrm(ks[11], (c_in,)))
    p['bn2_s'] = g2 / jnp.sqrt(v2 + eps)
    p['bn2_t'] = be2 - m2 * p['bn2_s']
    # MAF.fc_a : Linear(2C -> 2C/16) -> Linear(-> C) -> Sigmoid
    p['fa1_w'] = nrm(ks[12], (r, 2 * c_in), 0.2)
    p['fa1_b'] = nrm(ks[13], (r,))
    p['fa2_w'] = nrm(ks[14], (c_in, r), 0.2)
    p['fa2_b'] = nrm(ks[15], (c_in,))
    # MAF.fc_s : Conv2d(1, 1, kernel_size=1)
    p['fs_w'] = 1.0 + nrm(ks[16], ())
    p['fs_b'] = nrm(ks[17], ())
    # Down.channel : Conv2d(C_in, C_out, 1)
    p['ch_w'] = nrm(ks[18], (c_out, c_in, 1, 1))
    p['ch_b'] = nrm(ks[19], (c_out,))
    return p


def to_kernel_params(p, c_in, c_out):
    """Rearrange torch-layout parameters into kernel-friendly layouts."""
    cpad = ((c_out + LANES - 1) // LANES) * LANES
    kp = {}
    # conv weights (Cout, Cin, 3, 3) -> (9*Cin, Cout); row = (dy*3+dx)*Cin + cin,
    # matching the im2col tap/lane ordering built inside the kernel.
    kp['w1_cat'] = jnp.transpose(p['conv1_w'], (2, 3, 1, 0)).reshape(9 * c_in, c_in)
    kp['b1'] = p['conv1_b'].reshape(1, c_in)
    kp['bn1_s'] = p['bn1_s'].reshape(1, c_in)
    kp['bn1_t'] = p['bn1_t'].reshape(1, c_in)
    kp['w2_cat'] = jnp.transpose(p['conv2_w'], (2, 3, 1, 0)).reshape(9 * c_in, c_in)
    kp['b2'] = p['conv2_b'].reshape(1, c_in)
    kp['bn2_s'] = p['bn2_s'].reshape(1, c_in)
    kp['bn2_t'] = p['bn2_t'].reshape(1, c_in)
    kp['fa1_w'] = p['fa1_w'].T                  # (2C, R)
    kp['fa1_b'] = p['fa1_b'].reshape(1, -1)     # (1, R)
    kp['fa2_w'] = p['fa2_w'].T                  # (R, C)
    kp['fa2_b'] = p['fa2_b'].reshape(1, c_in)   # (1, C)
    kp['fs_w'] = p['fs_w'].reshape(1, 1)
    kp['fs_b'] = p['fs_b'].reshape(1, 1)
    # 1x1 projection, zero-padded to a lane-dense (C, cpad) / (1, cpad) layout.
    cw = p['ch_w'][:, :, 0, 0].T                # (C, Cout)
    kp['ch_w'] = jnp.zeros((c_in, cpad), jnp.float32).at[:, :c_out].set(cw)
    kp['ch_b'] = jnp.zeros((1, cpad), jnp.float32).at[:, :c_out].set(p['ch_b'])
    return kp


# ----------------------------------------------------------------------------
# Pallas kernel + wrapper
# ----------------------------------------------------------------------------
@functools.partial(jax.jit, static_argnums=(2,))
def down_pallas(x_nchw, kp, c_out):
    B, C, H, W = x_nchw.shape
    H2, W2 = H // 2, W // 2
    HW = H2 * W2
    CPAD = kp['ch_w'].shape[1]

    # NCHW -> (B, 4, HW, C): axis 1 is the 2x2 pool-window position, channels on lanes.
    x_r = jnp.transpose(x_nchw, (0, 2, 3, 1)).reshape(B, H2, 2, W2, 2, C)
    x_r = jnp.transpose(x_r, (0, 2, 4, 1, 3, 5)).reshape(B, 4, HW, C)

    def kernel(x_ref,
               w1_ref, b1_ref, s1_ref, t1_ref,
               w2_ref, b2_ref, s2_ref, t2_ref,
               fa1w_ref, fa1b_ref, fa2w_ref, fa2b_ref,
               fsw_ref, fsb_ref, chw_ref, chb_ref,
               out_ref):
        # ---- hoist all parameters once (JAX does not CSE broadcasts) ----
        w1 = w1_ref[...]; b1 = b1_ref[...]; s1 = s1_ref[...]; t1 = t1_ref[...]
        w2 = w2_ref[...]; b2 = b2_ref[...]; s2 = s2_ref[...]; t2 = t2_ref[...]
        fa1w = fa1w_ref[...]; fa1b = fa1b_ref[...]
        fa2w = fa2w_ref[...]; fa2b = fa2b_ref[...]
        fsw = fsw_ref[...]; fsb = fsb_ref[...]
        chw = chw_ref[...]; chb = chb_ref[...]

        # ---- MaxPool2d(2): elementwise max of the 4 window slabs (pure VPU) ----
        xv = x_ref[...]                                          # (4, HW, C)
        pooled = jnp.maximum(jnp.maximum(xv[0], xv[1]),
                             jnp.maximum(xv[2], xv[3]))          # (HW, C)

        # TODO(synk): HAM module definition is not in the provided source; treated as identity.
        x_h = pooled

        # ---- in-register im2col helpers for the 3x3 convs ----
        j_idx = lax.broadcasted_iota(jnp.int32, (HW, 1), 0) % W2
        not_left = j_idx >= 1
        not_right = j_idx <= W2 - 2

        def col_shift(v, dx):
            # t[(i, j)] = v[(i, j + dx)] if 0 <= j+dx < W2 else 0
            if dx == 0:
                return v
            z = jnp.zeros((1, C), v.dtype)
            if dx < 0:
                t = jnp.concatenate([z, v[:HW - 1, :]], axis=0)
                return jnp.where(not_left, t, 0.0)
            t = jnp.concatenate([v[1:, :], z], axis=0)
            return jnp.where(not_right, t, 0.0)

        def row_shift(v, dy):
            # t[(i, j)] = v[(i + dy, j)] if 0 <= i+dy < H2 else 0  (W2-sublane-aligned shift)
            if dy == 0:
                return v
            z = jnp.zeros((W2, C), v.dtype)
            if dy < 0:
                return jnp.concatenate([z, v[:HW - W2, :]], axis=0)
            return jnp.concatenate([v[W2:, :], z], axis=0)

        def im2col(v):
            cols = {dx: col_shift(v, dx) for dx in (-1, 0, 1)}
            taps = [row_shift(cols[k % 3 - 1], k // 3 - 1) for k in range(9)]
            return jnp.concatenate(taps, axis=1)                 # (HW, 9C)

        # ---- DC: residual double conv; each 3x3 conv is one K=9C MXU matmul ----
        y = jnp.dot(im2col(pooled), w1, preferred_element_type=jnp.float32) + b1
        y = jnp.maximum(y * s1 + t1, 0.0)                        # BN1 (eval affine) + ReLU
        y = jnp.dot(im2col(y), w2, preferred_element_type=jnp.float32) + b2
        y = jnp.maximum(y * s2 + t2, 0.0)                        # BN2 + ReLU
        x_c = pooled + y                                         # residual add

        # ---- channel attention (fc_a) ----
        mean_c = jnp.mean(x_c, axis=0, keepdims=True)            # (1, C)
        mean_h = jnp.mean(x_h, axis=0, keepdims=True)            # (1, C)
        a_in = jnp.concatenate([mean_c, mean_h], axis=1)         # (1, 2C)
        h1 = jnp.dot(a_in, fa1w, preferred_element_type=jnp.float32) + fa1b
        a = jnp.dot(h1, fa2w, preferred_element_type=jnp.float32) + fa2b
        a = jax.nn.sigmoid(jax.nn.sigmoid(a))                    # Sequential Sigmoid + extra .sigmoid()
        x_ch = a * x_c + (1.0 - a) * x_h                         # (HW, C)

        # ---- spatial attention (fc_s = 1x1 conv on channel mean) ----
        x_add = jnp.maximum(x_ch + x_c, 0.0)
        s_in = jnp.mean(x_add, axis=1, keepdims=True)            # (HW, 1)
        s = jax.nn.sigmoid(s_in * fsw + fsb)
        fused = s * x_c + (1.0 - s) * x_ch

        # ---- Down.channel: 1x1 projection, lane-padded to CPAD -> dense vst ----
        out_ref[...] = jnp.dot(fused, chw, preferred_element_type=jnp.float32) + chb

    def _pspec(arr):
        n = arr.ndim
        return pl.BlockSpec(arr.shape, lambda b, n=n: (0,) * n)

    param_order = ['w1_cat', 'b1', 'bn1_s', 'bn1_t',
                   'w2_cat', 'b2', 'bn2_s', 'bn2_t',
                   'fa1_w', 'fa1_b', 'fa2_w', 'fa2_b',
                   'fs_w', 'fs_b', 'ch_w', 'ch_b']
    params = [kp[k] for k in param_order]

    in_specs = [pl.BlockSpec((None, 4, HW, C), lambda b: (b, 0, 0, 0))]
    in_specs += [_pspec(q) for q in params]

    out = pl.pallas_call(
        kernel,
        out_shape=jax.ShapeDtypeStruct((B, HW, CPAD), jnp.float32),
        grid_spec=pltpu.PrefetchScalarGridSpec(
            num_scalar_prefetch=0,
            grid=(B,),
            in_specs=in_specs,
            out_specs=pl.BlockSpec((None, HW, CPAD), lambda b: (b, 0, 0)),
        ),
        compiler_params=pltpu.CompilerParams(dimension_semantics=("parallel",)),
    )(x_r, *params)

    # slice off the lane padding, back to NCHW
    out = out[:, :, :c_out].reshape(B, H2, W2, c_out)
    return jnp.transpose(out, (0, 3, 1, 2))


# ----------------------------------------------------------------------------
# Pure-JAX reference (NCHW, mirrors the PyTorch forward) for a sanity check
# ----------------------------------------------------------------------------
def down_reference(x_nchw, tp):
    HIGH = lax.Precision.HIGHEST
    B, C, H, W = x_nchw.shape
    xp = x_nchw.reshape(B, C, H // 2, 2, W // 2, 2).max(axis=(3, 5))   # MaxPool2d(2)
    x_h = xp  # HAM treated as identity

    def conv3(x, w, b):
        y = lax.conv_general_dilated(x, w, (1, 1), ((1, 1), (1, 1)),
                                     dimension_numbers=('NCHW', 'OIHW', 'NCHW'),
                                     precision=HIGH)
        return y + b[None, :, None, None]

    t = conv3(xp, tp['conv1_w'], tp['conv1_b'])
    t = jnp.maximum(t * tp['bn1_s'][None, :, None, None] + tp['bn1_t'][None, :, None, None], 0.0)
    t = conv3(t, tp['conv2_w'], tp['conv2_b'])
    t = jnp.maximum(t * tp['bn2_s'][None, :, None, None] + tp['bn2_t'][None, :, None, None], 0.0)
    x_c = xp + t

    a_in = jnp.concatenate([x_c, x_h], axis=1).mean(axis=(2, 3))       # (B, 2C)
    h1 = jnp.matmul(a_in, tp['fa1_w'].T, precision=HIGH) + tp['fa1_b']
    a = jnp.matmul(h1, tp['fa2_w'].T, precision=HIGH) + tp['fa2_b']
    a = jax.nn.sigmoid(jax.nn.sigmoid(a)).reshape(B, C, 1, 1)

    x_ch = a * x_c + (1.0 - a) * x_h
    x_add = jnp.maximum(x_ch + x_c, 0.0)
    s_in = x_add.mean(axis=1, keepdims=True)
    s = jax.nn.sigmoid(tp['fs_w'] * s_in + tp['fs_b'])
    fused = s * x_c + (1.0 - s) * x_ch

    cw = tp['ch_w'][:, :, 0, 0]                                        # (Cout, Cin)
    final = jnp.einsum('bchw,oc->bohw', fused, cw, precision=HIGH)
    return final + tp['ch_b'][None, :, None, None]


if __name__ == "__main__":
    B, C_IN, C_OUT, H, W = 2, 16, 32, 16, 16

    key = jax.random.PRNGKey(0)
    pkey, xkey = jax.random.split(key)
    tparams = init_params(pkey, C_IN, C_OUT)
    kparams = to_kernel_params(tparams, C_IN, C_OUT)

    x = jax.random.normal(xkey, (B, C_IN, H, W), dtype=jnp.float32)

    out_k = jax.block_until_ready(down_pallas(x, kparams, C_OUT))
    out_r = down_reference(x, tparams)

    assert out_k.shape == (B, C_OUT, H // 2, W // 2), out_k.shape
    err = float(jnp.max(jnp.abs(out_k - out_r)))
    # loose tolerance to accommodate MXU fp32 pass differences vs XLA conv
    assert err < 5e-2, f"max abs err {err}"
    print("KERNEL_OK")
</pallas_src>

<mosaic_0001>
module attributes {stable_mosaic.version = 11 : i64} {
  func.func @kernel(%arg0: i32, %arg1: memref<1x4x64x16xf32, #tpu.memory_space<vmem>>, %arg2: memref<144x16xf32, #tpu.memory_space<vmem>>, %arg3: memref<1x16xf32, #tpu.memory_space<vmem>>, %arg4: memref<1x16xf32, #tpu.memory_space<vmem>>, %arg5: memref<1x16xf32, #tpu.memory_space<vmem>>, %arg6: memref<144x16xf32, #tpu.memory_space<vmem>>, %arg7: memref<1x16xf32, #tpu.memory_space<vmem>>, %arg8: memref<1x16xf32, #tpu.memory_space<vmem>>, %arg9: memref<1x16xf32, #tpu.memory_space<vmem>>, %arg10: memref<32x2xf32, #tpu.memory_space<vmem>>, %arg11: memref<1x2xf32, #tpu.memory_space<vmem>>, %arg12: memref<2x16xf32, #tpu.memory_space<vmem>>, %arg13: memref<1x16xf32, #tpu.memory_space<vmem>>, %arg14: memref<1x1xf32, #tpu.memory_space<vmem>>, %arg15: memref<1x1xf32, #tpu.memory_space<vmem>>, %arg16: memref<16x128xf32, #tpu.memory_space<vmem>>, %arg17: memref<1x128xf32, #tpu.memory_space<vmem>>, %arg18: memref<1x64x128xf32, #tpu.memory_space<vmem>>) attributes {dimension_semantics = [#tpu.dimension_semantics<parallel>], iteration_bounds = array<i64: 2>, scalar_prefetch = 0 : i64, scratch_operands = 0 : i64, tpu.core_type = #tpu.core_type<tc>, window_params = [{transform_indices = @transform_0, window_bounds = array<i64: 1, 4, 64, 16>}, {pipeline_mode = #tpu.pipeline_mode<synchronous>, transform_indices = @transform_1, window_bounds = array<i64: 144, 16>}, {pipeline_mode = #tpu.pipeline_mode<synchronous>, transform_indices = @transform_2, window_bounds = array<i64: 1, 16>}, {pipeline_mode = #tpu.pipeline_mode<synchronous>, transform_indices = @transform_3, window_bounds = array<i64: 1, 16>}, {pipeline_mode = #tpu.pipeline_mode<synchronous>, transform_indices = @transform_4, window_bounds = array<i64: 1, 16>}, {pipeline_mode = #tpu.pipeline_mode<synchronous>, transform_indices = @transform_5, window_bounds = array<i64: 144, 16>}, {pipeline_mode = #tpu.pipeline_mode<synchronous>, transform_indices = @transform_6, window_bounds = array<i64: 1, 16>}, {pipeline_mode = #tpu.pipeline_mode<synchronous>, transform_indices = @transform_7, window_bounds = array<i64: 1, 16>}, {pipeline_mode = #tpu.pipeline_mode<synchronous>, transform_indices = @transform_8, window_bounds = array<i64: 1, 16>}, {pipeline_mode = #tpu.pipeline_mode<synchronous>, transform_indices = @transform_9, window_bounds = array<i64: 32, 2>}, {pipeline_mode = #tpu.pipeline_mode<synchronous>, transform_indices = @transform_10, window_bounds = array<i64: 1, 2>}, {pipeline_mode = #tpu.pipeline_mode<synchronous>, transform_indices = @transform_11, window_bounds = array<i64: 2, 16>}, {pipeline_mode = #tpu.pipeline_mode<synchronous>, transform_indices = @transform_12, window_bounds = array<i64: 1, 16>}, {pipeline_mode = #tpu.pipeline_mode<synchronous>, transform_indices = @transform_13, window_bounds = array<i64: 1, 1>}, {pipeline_mode = #tpu.pipeline_mode<synchronous>, transform_indices = @transform_14, window_bounds = array<i64: 1, 1>}, {pipeline_mode = #tpu.pipeline_mode<synchronous>, transform_indices = @transform_15, window_bounds = array<i64: 16, 128>}, {pipeline_mode = #tpu.pipeline_mode<synchronous>, transform_indices = @transform_16, window_bounds = array<i64: 1, 128>}, {transform_indices = @transform_17, window_bounds = array<i64: 1, 64, 128>}]} {
    %c0 = arith.constant 0 : index
    %c0_0 = arith.constant 0 : index
    %0 = vector.load %arg2[%c0, %c0_0] : memref<144x16xf32, #tpu.memory_space<vmem>>, vector<144x16xf32>
    %c0_1 = arith.constant 0 : index
    %c0_2 = arith.constant 0 : index
    %1 = vector.load %arg3[%c0_1, %c0_2] : memref<1x16xf32, #tpu.memory_space<vmem>>, vector<1x16xf32>
    %c0_3 = arith.constant 0 : index
    %c0_4 = arith.constant 0 : index
    %2 = vector.load %arg4[%c0_3, %c0_4] : memref<1x16xf32, #tpu.memory_space<vmem>>, vector<1x16xf32>
    %c0_5 = arith.constant 0 : index
    %c0_6 = arith.constant 0 : index
    %3 = vector.load %arg5[%c0_5, %c0_6] : memref<1x16xf32, #tpu.memory_space<vmem>>, vector<1x16xf32>
    %c0_7 = arith.constant 0 : index
    %c0_8 = arith.constant 0 : index
    %4 = vector.load %arg6[%c0_7, %c0_8] : memref<144x16xf32, #tpu.memory_space<vmem>>, vector<144x16xf32>
    %c0_9 = arith.constant 0 : index
    %c0_10 = arith.constant 0 : index
    %5 = vector.load %arg7[%c0_9, %c0_10] : memref<1x16xf32, #tpu.memory_space<vmem>>, vector<1x16xf32>
    %c0_11 = arith.constant 0 : index
    %c0_12 = arith.constant 0 : index
    %6 = vector.load %arg8[%c0_11, %c0_12] : memref<1x16xf32, #tpu.memory_space<vmem>>, vector<1x16xf32>
    %c0_13 = arith.constant 0 : index
    %c0_14 = arith.constant 0 : index
    %7 = vector.load %arg9[%c0_13, %c0_14] : memref<1x16xf32, #tpu.memory_space<vmem>>, vector<1x16xf32>
    %c0_15 = arith.constant 0 : index
    %c0_16 = arith.constant 0 : index
    %8 = vector.load %arg10[%c0_15, %c0_16] : memref<32x2xf32, #tpu.memory_space<vmem>>, vector<32x2xf32>
    %c0_17 = arith.constant 0 : index
    %c0_18 = arith.constant 0 : index
    %9 = vector.load %arg11[%c0_17, %c0_18] : memref<1x2xf32, #tpu.memory_space<vmem>>, vector<1x2xf32>
    %c0_19 = arith.constant 0 : index
    %c0_20 = arith.constant 0 : index
    %10 = vector.load %arg12[%c0_19, %c0_20] : memref<2x16xf32, #tpu.memory_space<vmem>>, vector<2x16xf32>
    %c0_21 = arith.constant 0 : index
    %c0_22 = arith.constant 0 : index
    %11 = vector.load %arg13[%c0_21, %c0_22] : memref<1x16xf32, #tpu.memory_space<vmem>>, vector<1x16xf32>
    %c0_23 = arith.constant 0 : index
    %c0_24 = arith.constant 0 : index
    %12 = vector.load %arg14[%c0_23, %c0_24] : memref<1x1xf32, #tpu.memory_space<vmem>>, vector<1x1xf32>
    %c0_25 = arith.constant 0 : index
    %c0_26 = arith.constant 0 : index
    %13 = vector.load %arg15[%c0_25, %c0_26] : memref<1x1xf32, #tpu.memory_space<vmem>>, vector<1x1xf32>
    %c0_27 = arith.constant 0 : index
    %c0_28 = arith.constant 0 : index
    %14 = vector.load %arg16[%c0_27, %c0_28] : memref<16x128xf32, #tpu.memory_space<vmem>>, vector<16x128xf32>
    %c0_29 = arith.constant 0 : index
    %c0_30 = arith.constant 0 : index
    %15 = vector.load %arg17[%c0_29, %c0_30] : memref<1x128xf32, #tpu.memory_space<vmem>>, vector<1x128xf32>
    %c0_31 = arith.constant 0 : index
    %c0_32 = arith.constant 0 : index
    %c0_33 = arith.constant 0 : index
    %c0_34 = arith.constant 0 : index
    %16 = vector.load %arg1[%c0_31, %c0_32, %c0_33, %c0_34] : memref<1x4x64x16xf32, #tpu.memory_space<vmem>>, vector<1x4x64x16xf32>
    %17 = vector.shape_cast %16 : vector<1x4x64x16xf32> to vector<4x64x16xf32>
    %18 = vector.extract_strided_slice %17 {offsets = [0, 0, 0], sizes = [1, 64, 16], strides = [1, 1, 1]} : vector<4x64x16xf32> to vector<1x64x16xf32>
    %19 = vector.shape_cast %18 : vector<1x64x16xf32> to vector<64x16xf32>
    %20 = vector.extract_strided_slice %17 {offsets = [1, 0, 0], sizes = [1, 64, 16], strides = [1, 1, 1]} : vector<4x64x16xf32> to vector<1x64x16xf32>
    %21 = vector.shape_cast %20 : vector<1x64x16xf32> to vector<64x16xf32>
    %22 = arith.maximumf %19, %21 : vector<64x16xf32>
    %23 = vector.extract_strided_slice %17 {offsets = [2, 0, 0], sizes = [1, 64, 16], strides = [1, 1, 1]} : vector<4x64x16xf32> to vector<1x64x16xf32>
    %24 = vector.shape_cast %23 : vector<1x64x16xf32> to vector<64x16xf32>
    %25 = vector.extract_strided_slice %17 {offsets = [3, 0, 0], sizes = [1, 64, 16], strides = [1, 1, 1]} : vector<4x64x16xf32> to vector<1x64x16xf32>
    %26 = vector.shape_cast %25 : vector<1x64x16xf32> to vector<64x16xf32>
    %27 = arith.maximumf %24, %26 : vector<64x16xf32>
    %28 = arith.maximumf %22, %27 : vector<64x16xf32>
    %29 = tpu.iota {dimensions = array<i32: 0>} : vector<64x1xi32>
    %c8_i32 = arith.constant 8 : i32
    %c0_i32 = arith.constant 0 : i32
    %30 = arith.cmpi eq, %c8_i32, %c0_i32 : i32
    %c1_i32 = arith.constant 1 : i32
    %31 = arith.select %30, %c1_i32, %c8_i32 : i32
    %32 = vector.broadcast %31 : i32 to vector<64x1xi32>
    %33 = arith.remsi %29, %32 : vector<64x1xi32>
    %c0_i32_35 = arith.constant 0 : i32
    %34 = vector.broadcast %c0_i32_35 : i32 to vector<64x1xi32>
    %35 = arith.cmpi ne, %33, %34 : vector<64x1xi32>
    %c0_i32_36 = arith.constant 0 : i32
    %36 = vector.broadcast %c0_i32_36 : i32 to vector<64x1xi32>
    %37 = arith.cmpi slt, %33, %36 : vector<64x1xi32>
    %c0_i32_37 = arith.constant 0 : i32
    %38 = arith.cmpi slt, %31, %c0_i32_37 : i32
    %39 = vector.broadcast %38 : i1 to vector<64x1xi1>
    %40 = vector.broadcast %39 : vector<64x1xi1> to vector<64x1xi1>
    %41 = arith.xori %37, %40 : vector<64x1xi1>
    %42 = arith.andi %41, %35 : vector<64x1xi1>
    %43 = vector.broadcast %31 : i32 to vector<64x1xi32>
    %44 = arith.addi %33, %43 : vector<64x1xi32>
    %45 = arith.select %42, %44, %33 : vector<64x1xi1>, vector<64x1xi32>
    %c1_i32_38 = arith.constant 1 : i32
    %46 = vector.broadcast %c1_i32_38 : i32 to vector<64x1xi32>
    %47 = arith.cmpi sge, %45, %46 : vector<64x1xi32>
    %c6_i32 = arith.constant 6 : i32
    %48 = vector.broadcast %c6_i32 : i32 to vector<64x1xi32>
    %49 = arith.cmpi sle, %45, %48 : vector<64x1xi32>
    %cst = arith.constant 0.000000e+00 : f32
    %50 = vector.broadcast %cst : f32 to vector<1x16xf32>
    %51 = vector.extract_strided_slice %28 {offsets = [0, 0], sizes = [63, 16], strides = [1, 1]} : vector<64x16xf32> to vector<63x16xf32>
    %52 = tpu.concatenate %50, %51 in 0 : vector<1x16xf32>, vector<63x16xf32> -> vector<64x16xf32>
    %cst_39 = arith.constant 0.000000e+00 : f32
    %53 = vector.shape_cast %47 : vector<64x1xi1> to vector<64x1xi1>
    %54 = vector.broadcast %53 : vector<64x1xi1> to vector<64x16xi1>
    %55 = vector.broadcast %cst_39 : f32 to vector<64x16xf32>
    %56 = arith.select %54, %52, %55 : vector<64x16xi1>, vector<64x16xf32>
    %cst_40 = arith.constant 0.000000e+00 : f32
    %57 = vector.broadcast %cst_40 : f32 to vector<1x16xf32>
    %58 = vector.extract_strided_slice %28 {offsets = [1, 0], sizes = [63, 16], strides = [1, 1]} : vector<64x16xf32> to vector<63x16xf32>
    %59 = tpu.concatenate %58, %57 in 0 : vector<63x16xf32>, vector<1x16xf32> -> vector<64x16xf32>
    %cst_41 = arith.constant 0.000000e+00 : f32
    %60 = vector.shape_cast %49 : vector<64x1xi1> to vector<64x1xi1>
    %61 = vector.broadcast %60 : vector<64x1xi1> to vector<64x16xi1>
    %62 = vector.broadcast %cst_41 : f32 to vector<64x16xf32>
    %63 = arith.select %61, %59, %62 : vector<64x16xi1>, vector<64x16xf32>
    %cst_42 = arith.constant 0.000000e+00 : f32
    %64 = vector.broadcast %cst_42 : f32 to vector<8x16xf32>
    %65 = vector.extract_strided_slice %56 {offsets = [0, 0], sizes = [56, 16], strides = [1, 1]} : vector<64x16xf32> to vector<56x16xf32>
    %66 = tpu.concatenate %64, %65 in 0 : vector<8x16xf32>, vector<56x16xf32> -> vector<64x16xf32>
    %cst_43 = arith.constant 0.000000e+00 : f32
    %67 = vector.broadcast %cst_43 : f32 to vector<8x16xf32>
    %68 = vector.extract_strided_slice %28 {offsets = [0, 0], sizes = [56, 16], strides = [1, 1]} : vector<64x16xf32> to vector<56x16xf32>
    %69 = tpu.concatenate %67, %68 in 0 : vector<8x16xf32>, vector<56x16xf32> -> vector<64x16xf32>
    %cst_44 = arith.constant 0.000000e+00 : f32
    %70 = vector.broadcast %cst_44 : f32 to vector<8x16xf32>
    %71 = vector.extract_strided_slice %63 {offsets = [0, 0], sizes = [56, 16], strides = [1, 1]} : vector<64x16xf32> to vector<56x16xf32>
    %72 = tpu.concatenate %70, %71 in 0 : vector<8x16xf32>, vector<56x16xf32> -> vector<64x16xf32>
    %cst_45 = arith.constant 0.000000e+00 : f32
    %73 = vector.broadcast %cst_45 : f32 to vector<8x16xf32>
    %74 = vector.extract_strided_slice %56 {offsets = [8, 0], sizes = [56, 16], strides = [1, 1]} : vector<64x16xf32> to vector<56x16xf32>
    %75 = tpu.concatenate %74, %73 in 0 : vector<56x16xf32>, vector<8x16xf32> -> vector<64x16xf32>
    %cst_46 = arith.constant 0.000000e+00 : f32
    %76 = vector.broadcast %cst_46 : f32 to vector<8x16xf32>
    %77 = vector.extract_strided_slice %28 {offsets = [8, 0], sizes = [56, 16], strides = [1, 1]} : vector<64x16xf32> to vector<56x16xf32>
    %78 = tpu.concatenate %77, %76 in 0 : vector<56x16xf32>, vector<8x16xf32> -> vector<64x16xf32>
    %cst_47 = arith.constant 0.000000e+00 : f32
    %79 = vector.broadcast %cst_47 : f32 to vector<8x16xf32>
    %80 = vector.extract_strided_slice %63 {offsets = [8, 0], sizes = [56, 16], strides = [1, 1]} : vector<64x16xf32> to vector<56x16xf32>
    %81 = tpu.concatenate %80, %79 in 0 : vector<56x16xf32>, vector<8x16xf32> -> vector<64x16xf32>
    %82 = tpu.concatenate %66, %69, %72, %56, %28, %63, %75, %78, %81 in 1 : vector<64x16xf32>, vector<64x16xf32>, vector<64x16xf32>, vector<64x16xf32>, vector<64x16xf32>, vector<64x16xf32>, vector<64x16xf32>, vector<64x16xf32>, vector<64x16xf32> -> vector<64x144xf32>
    %cst_48 = arith.constant dense<0.000000e+00> : vector<64x16xf32>
    %83 = tpu.matmul %82, %0, %cst_48 {dimension_numbers = #tpu.dot_dimension_numbers<[1], [0], [0], [1], [0, 0, 1, 1], [], []>} : vector<64x144xf32>, vector<144x16xf32>, vector<64x16xf32> -> vector<64x16xf32>
    %84 = vector.broadcast %1 : vector<1x16xf32> to vector<64x16xf32>
    %85 = arith.addf %83, %84 : vector<64x16xf32>
    %86 = vector.broadcast %2 : vector<1x16xf32> to vector<64x16xf32>
    %87 = arith.mulf %85, %86 : vector<64x16xf32>
    %88 = vector.broadcast %3 : vector<1x16xf32> to vector<64x16xf32>
    %89 = arith.addf %87, %88 : vector<64x16xf32>
    %cst_49 = arith.constant 0.000000e+00 : f32
    %90 = vector.broadcast %cst_49 : f32 to vector<64x16xf32>
    %91 = arith.maximumf %89, %90 : vector<64x16xf32>
    %cst_50 = arith.constant 0.000000e+00 : f32
    %92 = vector.broadcast %cst_50 : f32 to vector<1x16xf32>
    %93 = vector.extract_strided_slice %91 {offsets = [0, 0], sizes = [63, 16], strides = [1, 1]} : vector<64x16xf32> to vector<63x16xf32>
    %94 = tpu.concatenate %92, %93 in 0 : vector<1x16xf32>, vector<63x16xf32> -> vector<64x16xf32>
    %cst_51 = arith.constant 0.000000e+00 : f32
    %95 = vector.shape_cast %47 : vector<64x1xi1> to vector<64x1xi1>
    %96 = vector.broadcast %95 : vector<64x1xi1> to vector<64x16xi1>
    %97 = vector.broadcast %cst_51 : f32 to vector<64x16xf32>
    %98 = arith.select %96, %94, %97 : vector<64x16xi1>, vector<64x16xf32>
    %cst_52 = arith.constant 0.000000e+00 : f32
    %99 = vector.broadcast %cst_52 : f32 to vector<1x16xf32>
    %100 = vector.extract_strided_slice %91 {offsets = [1, 0], sizes = [63, 16], strides = [1, 1]} : vector<64x16xf32> to vector<63x16xf32>
    %101 = tpu.concatenate %100, %99 in 0 : vector<63x16xf32>, vector<1x16xf32> -> vector<64x16xf32>
    %cst_53 = arith.constant 0.000000e+00 : f32
    %102 = vector.shape_cast %49 : vector<64x1xi1> to vector<64x1xi1>
    %103 = vector.broadcast %102 : vector<64x1xi1> to vector<64x16xi1>
    %104 = vector.broadcast %cst_53 : f32 to vector<64x16xf32>
    %105 = arith.select %103, %101, %104 : vector<64x16xi1>, vector<64x16xf32>
    %cst_54 = arith.constant 0.000000e+00 : f32
    %106 = vector.broadcast %cst_54 : f32 to vector<8x16xf32>
    %107 = vector.extract_strided_slice %98 {offsets = [0, 0], sizes = [56, 16], strides = [1, 1]} : vector<64x16xf32> to vector<56x16xf32>
    %108 = tpu.concatenate %106, %107 in 0 : vector<8x16xf32>, vector<56x16xf32> -> vector<64x16xf32>
    %cst_55 = arith.constant 0.000000e+00 : f32
    %109 = vector.broadcast %cst_55 : f32 to vector<8x16xf32>
    %110 = vector.extract_strided_slice %91 {offsets = [0, 0], sizes = [56, 16], strides = [1, 1]} : vector<64x16xf32> to vector<56x16xf32>
    %111 = tpu.concatenate %109, %110 in 0 : vector<8x16xf32>, vector<56x16xf32> -> vector<64x16xf32>
    %cst_56 = arith.constant 0.000000e+00 : f32
    %112 = vector.broadcast %cst_56 : f32 to vector<8x16xf32>
    %113 = vector.extract_strided_slice %105 {offsets = [0, 0], sizes = [56, 16], strides = [1, 1]} : vector<64x16xf32> to vector<56x16xf32>
    %114 = tpu.concatenate %112, %113 in 0 : vector<8x16xf32>, vector<56x16xf32> -> vector<64x16xf32>
    %cst_57 = arith.constant 0.000000e+00 : f32
    %115 = vector.broadcast %cst_57 : f32 to vector<8x16xf32>
    %116 = vector.extract_strided_slice %98 {offsets = [8, 0], sizes = [56, 16], strides = [1, 1]} : vector<64x16xf32> to vector<56x16xf32>
    %117 = tpu.concatenate %116, %115 in 0 : vector<56x16xf32>, vector<8x16xf32> -> vector<64x16xf32>
    %cst_58 = arith.constant 0.000000e+00 : f32
    %118 = vector.broadcast %cst_58 : f32 to vector<8x16xf32>
    %119 = vector.extract_strided_slice %91 {offsets = [8, 0], sizes = [56, 16], strides = [1, 1]} : vector<64x16xf32> to vector<56x16xf32>
    %120 = tpu.concatenate %119, %118 in 0 : vector<56x16xf32>, vector<8x16xf32> -> vector<64x16xf32>
    %cst_59 = arith.constant 0.000000e+00 : f32
    %121 = vector.broadcast %cst_59 : f32 to vector<8x16xf32>
    %122 = vector.extract_strided_slice %105 {offsets = [8, 0], sizes = [56, 16], strides = [1, 1]} : vector<64x16xf32> to vector<56x16xf32>
    %123 = tpu.concatenate %122, %121 in 0 : vector<56x16xf32>, vector<8x16xf32> -> vector<64x16xf32>
    %124 = tpu.concatenate %108, %111, %114, %98, %91, %105, %117, %120, %123 in 1 : vector<64x16xf32>, vector<64x16xf32>, vector<64x16xf32>, vector<64x16xf32>, vector<64x16xf32>, vector<64x16xf32>, vector<64x16xf32>, vector<64x16xf32>, vector<64x16xf32> -> vector<64x144xf32>
    %cst_60 = arith.constant dense<0.000000e+00> : vector<64x16xf32>
    %125 = tpu.matmul %124, %4, %cst_60 {dimension_numbers = #tpu.dot_dimension_numbers<[1], [0], [0], [1], [0, 0, 1, 1], [], []>} : vector<64x144xf32>, vector<144x16xf32>, vector<64x16xf32> -> vector<64x16xf32>
    %126 = vector.broadcast %5 : vector<1x16xf32> to vector<64x16xf32>
    %127 = arith.addf %125, %126 : vector<64x16xf32>
    %128 = vector.broadcast %6 : vector<1x16xf32> to vector<64x16xf32>
    %129 = arith.mulf %127, %128 : vector<64x16xf32>
    %130 = vector.broadcast %7 : vector<1x16xf32> to vector<64x16xf32>
    %131 = arith.addf %129, %130 : vector<64x16xf32>
    %cst_61 = arith.constant 0.000000e+00 : f32
    %132 = vector.broadcast %cst_61 : f32 to vector<64x16xf32>
    %133 = arith.maximumf %131, %132 : vector<64x16xf32>
    %134 = arith.addf %28, %133 : vector<64x16xf32>
    %cst_62 = arith.constant dense<0.000000e+00> : vector<16xf32>
    %135 = vector.multi_reduction <add>, %134, %cst_62 [0] : vector<64x16xf32> to vector<16xf32>
    %136 = vector.shape_cast %135 : vector<16xf32> to vector<1x16xf32>
    %cst_63 = arith.constant 6.400000e+01 : f32
    %137 = vector.broadcast %cst_63 : f32 to vector<1x16xf32>
    %138 = arith.divf %136, %137 : vector<1x16xf32>
    %cst_64 = arith.constant dense<0.000000e+00> : vector<16xf32>
    %139 = vector.multi_reduction <add>, %28, %cst_64 [0] : vector<64x16xf32> to vector<16xf32>
    %140 = vector.shape_cast %139 : vector<16xf32> to vector<1x16xf32>
    %cst_65 = arith.constant 6.400000e+01 : f32
    %141 = vector.broadcast %cst_65 : f32 to vector<1x16xf32>
    %142 = arith.divf %140, %141 : vector<1x16xf32>
    %143 = tpu.concatenate %138, %142 in 1 : vector<1x16xf32>, vector<1x16xf32> -> vector<1x32xf32>
    %cst_66 = arith.constant dense<0.000000e+00> : vector<1x2xf32>
    %144 = tpu.matmul %143, %8, %cst_66 {dimension_numbers = #tpu.dot_dimension_numbers<[1], [0], [0], [1], [0, 0, 1, 1], [], []>} : vector<1x32xf32>, vector<32x2xf32>, vector<1x2xf32> -> vector<1x2xf32>
    %145 = arith.addf %144, %9 : vector<1x2xf32>
    %cst_67 = arith.constant dense<0.000000e+00> : vector<1x16xf32>
    %146 = tpu.matmul %145, %10, %cst_67 {dimension_numbers = #tpu.dot_dimension_numbers<[1], [0], [0], [1], [0, 0, 1, 1], [], []>} : vector<1x2xf32>, vector<2x16xf32>, vector<1x16xf32> -> vector<1x16xf32>
    %147 = arith.addf %146, %11 : vector<1x16xf32>
    %148 = arith.negf %147 : vector<1x16xf32>
    %149 = math.exp %148 : vector<1x16xf32>
    %cst_68 = arith.constant 1.000000e+00 : f32
    %150 = vector.broadcast %cst_68 : f32 to vector<1x16xf32>
    %151 = arith.addf %150, %149 : vector<1x16xf32>
    %152 = arith.divf %150, %151 : vector<1x16xf32>
    %153 = arith.negf %152 : vector<1x16xf32>
    %154 = math.exp %153 : vector<1x16xf32>
    %cst_69 = arith.constant 1.000000e+00 : f32
    %155 = vector.broadcast %cst_69 : f32 to vector<1x16xf32>
    %156 = arith.addf %155, %154 : vector<1x16xf32>
    %157 = arith.divf %155, %156 : vector<1x16xf32>
    %158 = vector.broadcast %157 : vector<1x16xf32> to vector<64x16xf32>
    %159 = arith.mulf %158, %134 : vector<64x16xf32>
    %cst_70 = arith.constant 1.000000e+00 : f32
    %160 = vector.broadcast %cst_70 : f32 to vector<1x16xf32>
    %161 = arith.subf %160, %157 : vector<1x16xf32>
    %162 = vector.broadcast %161 : vector<1x16xf32> to vector<64x16xf32>
    %163 = arith.mulf %162, %28 : vector<64x16xf32>
    %164 = arith.addf %159, %163 : vector<64x16xf32>
    %165 = arith.addf %164, %134 : vector<64x16xf32>
    %cst_71 = arith.constant 0.000000e+00 : f32
    %166 = vector.broadcast %cst_71 : f32 to vector<64x16xf32>
    %167 = arith.maximumf %165, %166 : vector<64x16xf32>
    %cst_72 = arith.constant dense<0.000000e+00> : vector<64xf32>
    %168 = vector.multi_reduction <add>, %167, %cst_72 [1] : vector<64x16xf32> to vector<64xf32>
    %169 = vector.shape_cast %168 : vector<64xf32> to vector<64x1xf32>
    %cst_73 = arith.constant 1.600000e+01 : f32
    %170 = vector.broadcast %cst_73 : f32 to vector<64x1xf32>
    %171 = arith.divf %169, %170 : vector<64x1xf32>
    %172 = vector.broadcast %12 : vector<1x1xf32> to vector<64x1xf32>
    %173 = arith.mulf %171, %172 : vector<64x1xf32>
    %174 = vector.broadcast %13 : vector<1x1xf32> to vector<64x1xf32>
    %175 = arith.addf %173, %174 : vector<64x1xf32>
    %176 = arith.negf %175 : vector<64x1xf32>
    %177 = math.exp %176 : vector<64x1xf32>
    %cst_74 = arith.constant 1.000000e+00 : f32
    %178 = vector.broadcast %cst_74 : f32 to vector<64x1xf32>
    %179 = arith.addf %178, %177 : vector<64x1xf32>
    %180 = arith.divf %178, %179 : vector<64x1xf32>
    %181 = vector.broadcast %180 : vector<64x1xf32> to vector<64x16xf32>
    %182 = arith.mulf %181, %134 : vector<64x16xf32>
    %cst_75 = arith.constant 1.000000e+00 : f32
    %183 = vector.broadcast %cst_75 : f32 to vector<64x1xf32>
    %184 = arith.subf %183, %180 : vector<64x1xf32>
    %185 = vector.broadcast %184 : vector<64x1xf32> to vector<64x16xf32>
    %186 = arith.mulf %185, %164 : vector<64x16xf32>
    %187 = arith.addf %182, %186 : vector<64x16xf32>
    %cst_76 = arith.constant dense<0.000000e+00> : vector<64x128xf32>
    %188 = tpu.matmul %187, %14, %cst_76 {dimension_numbers = #tpu.dot_dimension_numbers<[1], [0], [0], [1], [0, 0, 1, 1], [], []>} : vector<64x16xf32>, vector<16x128xf32>, vector<64x128xf32> -> vector<64x128xf32>
    %189 = vector.broadcast %15 : vector<1x128xf32> to vector<64x128xf32>
    %190 = arith.addf %188, %189 : vector<64x128xf32>
    %c0_77 = arith.constant 0 : index
    %c0_78 = arith.constant 0 : index
    %c0_79 = arith.constant 0 : index
    %191 = vector.load %arg18[%c0_77, %c0_78, %c0_79] : memref<1x64x128xf32, #tpu.memory_space<vmem>>, vector<1x64x128xf32>
    %192 = vector.shape_cast %191 : vector<1x64x128xf32> to vector<64x128xf32>
    %193 = vector.shape_cast %190 : vector<64x128xf32> to vector<1x64x128xf32>
    tpu.vector_store %arg18[%c0_77, %c0_78, %c0_79], %193 {strides = array<i32>} : memref<1x64x128xf32, #tpu.memory_space<vmem>>, vector<1x64x128xf32>,
    return
  }
  func.func @transform_0(%arg0: i32) -> (i32, i32, i32, i32) {
    %c0_i32 = arith.constant 0 : i32
    %c0_i32_0 = arith.constant 0 : i32
    %c0_i32_1 = arith.constant 0 : i32
    %c0_i32_2 = arith.constant 0 : i32
    return %arg0, %c0_i32, %c0_i32_0, %c0_i32_1 : i32, i32, i32, i32
  }
  func.func @transform_1(%arg0: i32) -> (i32, i32) {
    %c0_i32 = arith.constant 0 : i32
    %c0_i32_0 = arith.constant 0 : i32
    %c0_i32_1 = arith.constant 0 : i32
    return %c0_i32, %c0_i32_0 : i32, i32
  }
  func.func @transform_2(%arg0: i32) -> (i32, i32) {
    %c0_i32 = arith.constant 0 : i32
    %c0_i32_0 = arith.constant 0 : i32
    %c0_i32_1 = arith.constant 0 : i32
    return %c0_i32, %c0_i32_0 : i32, i32
  }
  func.func @transform_3(%arg0: i32) -> (i32, i32) {
    %c0_i32 = arith.constant 0 : i32
    %c0_i32_0 = arith.constant 0 : i32
    %c0_i32_1 = arith.constant 0 : i32
    return %c0_i32, %c0_i32_0 : i32, i32
  }
  func.func @transform_4(%arg0: i32) -> (i32, i32) {
    %c0_i32 = arith.constant 0 : i32
    %c0_i32_0 = arith.constant 0 : i32
    %c0_i32_1 = arith.constant 0 : i32
    return %c0_i32, %c0_i32_0 : i32, i32
  }
  func.func @transform_5(%arg0: i32) -> (i32, i32) {
    %c0_i32 = arith.constant 0 : i32
    %c0_i32_0 = arith.constant 0 : i32
    %c0_i32_1 = arith.constant 0 : i32
    return %c0_i32, %c0_i32_0 : i32, i32
  }
  func.func @transform_6(%arg0: i32) -> (i32, i32) {
    %c0_i32 = arith.constant 0 : i32
    %c0_i32_0 = arith.constant 0 : i32
    %c0_i32_1 = arith.constant 0 : i32
    return %c0_i32, %c0_i32_0 : i32, i32
  }
  func.func @transform_7(%arg0: i32) -> (i32, i32) {
    %c0_i32 = arith.constant 0 : i32
    %c0_i32_0 = arith.constant 0 : i32
    %c0_i32_1 = arith.constant 0 : i32
    return %c0_i32, %c0_i32_0 : i32, i32
  }
  func.func @transform_8(%arg0: i32) -> (i32, i32) {
    %c0_i32 = arith.constant 0 : i32
    %c0_i32_0 = arith.constant 0 : i32
    %c0_i32_1 = arith.constant 0 : i32
    return %c0_i32, %c0_i32_0 : i32, i32
  }
  func.func @transform_9(%arg0: i32) -> (i32, i32) {
    %c0_i32 = arith.constant 0 : i32
    %c0_i32_0 = arith.constant 0 : i32
    %c0_i32_1 = arith.constant 0 : i32
    return %c0_i32, %c0_i32_0 : i32, i32
  }
  func.func @transform_10(%arg0: i32) -> (i32, i32) {
    %c0_i32 = arith.constant 0 : i32
    %c0_i32_0 = arith.constant 0 : i32
    %c0_i32_1 = arith.constant 0 : i32
    return %c0_i32, %c0_i32_0 : i32, i32
  }
  func.func @transform_11(%arg0: i32) -> (i32, i32) {
    %c0_i32 = arith.constant 0 : i32
    %c0_i32_0 = arith.constant 0 : i32
    %c0_i32_1 = arith.constant 0 : i32
    return %c0_i32, %c0_i32_0 : i32, i32
  }
  func.func @transform_12(%arg0: i32) -> (i32, i32) {
    %c0_i32 = arith.constant 0 : i32
    %c0_i32_0 = arith.constant 0 : i32
    %c0_i32_1 = arith.constant 0 : i32
    return %c0_i32, %c0_i32_0 : i32, i32
  }
  func.func @transform_13(%arg0: i32) -> (i32, i32) {
    %c0_i32 = arith.constant 0 : i32
    %c0_i32_0 = arith.constant 0 : i32
    %c0_i32_1 = arith.constant 0 : i32
    return %c0_i32, %c0_i32_0 : i32, i32
  }
  func.func @transform_14(%arg0: i32) -> (i32, i32) {
    %c0_i32 = arith.constant 0 : i32
    %c0_i32_0 = arith.constant 0 : i32
    %c0_i32_1 = arith.constant 0 : i32
    return %c0_i32, %c0_i32_0 : i32, i32
  }
  func.func @transform_15(%arg0: i32) -> (i32, i32) {
    %c0_i32 = arith.constant 0 : i32
    %c0_i32_0 = arith.constant 0 : i32
    %c0_i32_1 = arith.constant 0 : i32
    return %c0_i32, %c0_i32_0 : i32, i32
  }
  func.func @transform_16(%arg0: i32) -> (i32, i32) {
    %c0_i32 = arith.constant 0 : i32
    %c0_i32_0 = arith.constant 0 : i32
    %c0_i32_1 = arith.constant 0 : i32
    return %c0_i32, %c0_i32_0 : i32, i32
  }
  func.func @transform_17(%arg0: i32) -> (i32, i32, i32) {
    %c0_i32 = arith.constant 0 : i32
    %c0_i32_0 = arith.constant 0 : i32
    %c0_i32_1 = arith.constant 0 : i32
    return %arg0, %c0_i32, %c0_i32_0 : i32, i32, i32
  }
}

</mosaic_0001>

<llo_original>
// kernel: down_pallas.1
$region0: #{down_pallas.1}
  #allocation0 [shape = 'u32[]', space=smem, size = 0x4, offset = 0x4, fixed_abs, tag = 'smem constant byte address 0x4 - core index']
  #allocation1 [shape = 'u32[144,128]{1,0:T(1,128)}', space=vmem, size = 0x12000, scoped, tag = 'internal scratch']
  #allocation2 [shape = 'f32[1,1]{1,0:T(1,128)S(1)}', space=vmem, size = 0x200, scoped, tag = 'scoped memory for down_pallas.1']
  #allocation3 [shape = 'f32[1,1]{1,0:T(1,128)S(1)}', space=vmem, size = 0x200, scoped, tag = 'scoped memory for down_pallas.1']
  %s0 = inlined_call_operand.vmem [shape: f32[2,4,64,16], index: 0, kind: input, shape index: {}]
  %s1 = inlined_call_operand.vmem [shape: f32[144,16], index: 1, kind: input, shape index: {}]
  %s2 = inlined_call_operand.vmem [shape: f32[1,16], index: 2, kind: input, shape index: {}]
  %s3 = inlined_call_operand.vmem [shape: f32[1,16], index: 3, kind: input, shape index: {}]
  %s4 = inlined_call_operand.vmem [shape: f32[1,16], index: 4, kind: input, shape index: {}]
  %s5 = inlined_call_operand.vmem [shape: f32[144,16], index: 5, kind: input, shape index: {}]
  %s6 = inlined_call_operand.vmem [shape: f32[1,16], index: 6, kind: input, shape index: {}]
  %s7 = inlined_call_operand.vmem [shape: f32[1,16], index: 7, kind: input, shape index: {}]
  %s8 = inlined_call_operand.vmem [shape: f32[1,16], index: 8, kind: input, shape index: {}]
  %s9 = inlined_call_operand.vmem [shape: f32[32,2], index: 9, kind: input, shape index: {}]
  %s10 = inlined_call_operand.vmem [shape: f32[1,2], index: 10, kind: input, shape index: {}]
  %s11 = inlined_call_operand.vmem [shape: f32[2,16], index: 11, kind: input, shape index: {}]
  %s12 = inlined_call_operand.vmem [shape: f32[1,16], index: 12, kind: input, shape index: {}]
  %s13 = inlined_call_operand.<no memory space> [shape: f32[1,1], index: 13, kind: input, shape index: {}]
  %s14 = inlined_call_operand.<no memory space> [shape: f32[1,1], index: 14, kind: input, shape index: {}]
  %s15 = inlined_call_operand.vmem [shape: f32[16,128], index: 15, kind: input, shape index: {}]
  %s16 = inlined_call_operand.vmem [shape: f32[1,128], index: 16, kind: input, shape index: {}]
  %s17 = inlined_call_operand.vmem [shape: f32[2,64,128], index: 17, kind: output, shape index: {}]
  %s18 = sld [smem:[#allocation0]]
  $region101: #{down_pallas.1} parent=0
    _
  %s20 = ssub.s32 1, %s18
  %s21 = scalar_select 0, %s20, %s18
  %v22 = vstv %s13
  %23 = vst [vmem:[#allocation2] sm:$0x1] %v22
  %v24 = vstv %s14
  %25 = vst [vmem:[#allocation3] sm:$0x1] %v24
  loop: start=0, step=1, limit=4
  $region2: #{down_pallas.1} parent=0 // loop_pre_header
    _
  $region3: #{down_pallas.1} parent=0 // loop_header
    %s27 = sphi 0, %s31
    %p28 = scmp.ge.s32.totalorder %s27, 4
    %s37 = sphi 0, %s39
    %s40 = sphi 0, %s37
    %s41 = sphi 0, %s40
    %s57 = sphi 0, %s41
    %s61 = sphi 0, %s61
    %s63 = sphi 0, %s61
    %s64 = sphi 0, %s63
    %s78 = sphi 0, %s64
    %s82 = sphi 0, %s82
    %s84 = sphi 0, %s82
    %s85 = sphi 0, %s84
    %s99 = sphi 0, %s85
    %s103 = sphi 0, %s103
    %s105 = sphi 0, %s103
    %s106 = sphi 0, %s105
    %s120 = sphi 0, %s106
    %s124 = sphi 0, %s124
    %s126 = sphi 0, %s124
    %s127 = sphi 0, %s126
    %s141 = sphi 0, %s127
    %s145 = sphi 0, %s145
    %s147 = sphi 0, %s145
    %s148 = sphi 0, %s147
    %s162 = sphi 0, %s148
    %s166 = sphi 0, %s166
    %s168 = sphi 0, %s166
    %s169 = sphi 0, %s168
    %s183 = sphi 0, %s169
    %s187 = sphi 0, %s187
    %s189 = sphi 0, %s187
    %s190 = sphi 0, %s189
    %s204 = sphi 0, %s190
    %s208 = sphi 0, %s208
    %s210 = sphi 0, %s208
    %s211 = sphi 0, %s210
    %s225 = sphi 0, %s211
    %s229 = sphi 0, %s229
    %s231 = sphi 0, %s229
    %s232 = sphi 0, %s231
    %s246 = sphi 0, %s232
    %s250 = sphi 0, %s250
    %s252 = sphi 0, %s250
    %s253 = sphi 0, %s252
    %s267 = sphi 0, %s253
    %s271 = sphi 0, %s271
    %s273 = sphi 0, %s271
    %s274 = sphi 0, %s273
    %s288 = sphi 0, %s274
    %s292 = sphi 0, %s292
    %s294 = sphi 0, %s292
    %s295 = sphi 0, %s294
    %s309 = sphi 0, %s295
    %s313 = sphi 0, %s313
    %s315 = sphi 0, %s313
    %s316 = sphi 0, %s315
    %s330 = sphi 0, %s316
    %s334 = sphi 0, %s334
    %s336 = sphi 0, %s334
    %s337 = sphi 0, %s336
    %s351 = sphi 0, %s337
    %s355 = sphi 0, %s355
    %s357 = sphi 0, %s355
    %s358 = sphi 0, %s357
    %s372 = sphi 0, %s358
    %s376 = sphi 0, %s376
    %s378 = sphi 0, %s376
    %s379 = sphi 0, %s378
    %s393 = sphi 0, %s379
    %s399 = sphi 0, %s401
    %s402 = sphi 0, %s399
    %s403 = sphi 0, %s402
    %s419 = sphi 0, %s403
  $region4: #{down_pallas.1} parent=0 // loop_header_branch
    %30 = sbr.rel (%p28) target = $region8
  $region5: #{down_pallas.1} parent=0 // loop_body
    %s32 = ssub.s32 %s27, 1
    %s33 = ssub.s32 %s27, 2
    %s34 = sadd.s32 %s27, 1
    %s35 = ssub.s32 %s27, %s34
    %p36 = scmp.eq.s32.totalorder %s35, 0
    %s38 = sadd.s32 %s37, 1
    %s39 = scalar_select %p36, %s37, %s38
    %p42 = pneg %p36
    %p43 = scmp.eq.s32.totalorder %s27, 1
    %p44 = por %p42, %p43
    %p45 = scmp.ne.s32.totalorder %s37, %s40
    %p46 = scmp.eq.s32.totalorder %s27, 0
    %p47 = por %p45, %p46
    %p48 = scmp.ne.s32.totalorder %s37, %s40
    %p49 = scmp.eq.s32.totalorder %s32, 1
    %p50 = por %p48, %p49
    %p51 = scmp.ne.s32.totalorder %s40, %s41
    %p52 = scmp.eq.s32.totalorder %s32, 0
    %p53 = por %p51, %p52
    %p54 = scmp.ne.s32.totalorder %s40, %s41
    %p55 = scmp.eq.s32.totalorder %s33, 1
    %p56 = por %p54, %p55
    %p58 = scmp.ne.s32.totalorder %s41, %s57
    %p59 = scmp.eq.s32.totalorder %s33, 0
    %p60 = por %p58, %p59
    %s62 = sadd.s32 %s61, 1
    %p65 = scmp.eq.s32.totalorder %s27, 1
    %p66 = scmp.ne.s32.totalorder %s61, %s63
    %p67 = scmp.eq.s32.totalorder %s27, 0
    %p68 = por %p66, %p67
    %p69 = scmp.ne.s32.totalorder %s61, %s63
    %p70 = scmp.eq.s32.totalorder %s32, 1
    %p71 = por %p69, %p70
    %p72 = scmp.ne.s32.totalorder %s63, %s64
    %p73 = scmp.eq.s32.totalorder %s32, 0
    %p74 = por %p72, %p73
    %p75 = scmp.ne.s32.totalorder %s63, %s64
    %p76 = scmp.eq.s32.totalorder %s33, 1
    %p77 = por %p75, %p76
    %p79 = scmp.ne.s32.totalorder %s64, %s78
    %p80 = scmp.eq.s32.totalorder %s33, 0
    %p81 = por %p79, %p80
    %s83 = sadd.s32 %s82, 1
    %p86 = scmp.eq.s32.totalorder %s27, 1
    %p87 = scmp.ne.s32.totalorder %s82, %s84
    %p88 = scmp.eq.s32.totalorder %s27, 0
    %p89 = por %p87, %p88
    %p90 = scmp.ne.s32.totalorder %s82, %s84
    %p91 = scmp.eq.s32.totalorder %s32, 1
    %p92 = por %p90, %p91
    %p93 = scmp.ne.s32.totalorder %s84, %s85
    %p94 = scmp.eq.s32.totalorder %s32, 0
    %p95 = por %p93, %p94
    %p96 = scmp.ne.s32.totalorder %s84, %s85
    %p97 = scmp.eq.s32.totalorder %s33, 1
    %p98 = por %p96, %p97
    %p100 = scmp.ne.s32.totalorder %s85, %s99
    %p101 = scmp.eq.s32.totalorder %s33, 0
    %p102 = por %p100, %p101
    %s104 = sadd.s32 %s103, 1
    %p107 = scmp.eq.s32.totalorder %s27, 1
    %p108 = scmp.ne.s32.totalorder %s103, %s105
    %p109 = scmp.eq.s32.totalorder %s27, 0
    %p110 = por %p108, %p109
    %p111 = scmp.ne.s32.totalorder %s103, %s105
    %p112 = scmp.eq.s32.totalorder %s32, 1
    %p113 = por %p111, %p112
    %p114 = scmp.ne.s32.totalorder %s105, %s106
    %p115 = scmp.eq.s32.totalorder %s32, 0
    %p116 = por %p114, %p115
    %p117 = scmp.ne.s32.totalorder %s105, %s106
    %p118 = scmp.eq.s32.totalorder %s33, 1
    %p119 = por %p117, %p118
    %p121 = scmp.ne.s32.totalorder %s106, %s120
    %p122 = scmp.eq.s32.totalorder %s33, 0
    %p123 = por %p121, %p122
    %s125 = sadd.s32 %s124, 1
    %p128 = scmp.eq.s32.totalorder %s27, 1
    %p129 = scmp.ne.s32.totalorder %s124, %s126
    %p130 = scmp.eq.s32.totalorder %s27, 0
    %p131 = por %p129, %p130
    %p132 = scmp.ne.s32.totalorder %s124, %s126
    %p133 = scmp.eq.s32.totalorder %s32, 1
    %p134 = por %p132, %p133
    %p135 = scmp.ne.s32.totalorder %s126, %s127
    %p136 = scmp.eq.s32.totalorder %s32, 0
    %p137 = por %p135, %p136
    %p138 = scmp.ne.s32.totalorder %s126, %s127
    %p139 = scmp.eq.s32.totalorder %s33, 1
    %p140 = por %p138, %p139
    %p142 = scmp.ne.s32.totalorder %s127, %s141
    %p143 = scmp.eq.s32.totalorder %s33, 0
    %p144 = por %p142, %p143
    %s146 = sadd.s32 %s145, 1
    %p149 = scmp.eq.s32.totalorder %s27, 1
    %p150 = scmp.ne.s32.totalorder %s145, %s147
    %p151 = scmp.eq.s32.totalorder %s27, 0
    %p152 = por %p150, %p151
    %p153 = scmp.ne.s32.totalorder %s145, %s147
    %p154 = scmp.eq.s32.totalorder %s32, 1
    %p155 = por %p153, %p154
    %p156 = scmp.ne.s32.totalorder %s147, %s148
    %p157 = scmp.eq.s32.totalorder %s32, 0
    %p158 = por %p156, %p157
    %p159 = scmp.ne.s32.totalorder %s147, %s148
    %p160 = scmp.eq.s32.totalorder %s33, 1
    %p161 = por %p159, %p160
    %p163 = scmp.ne.s32.totalorder %s148, %s162
    %p164 = scmp.eq.s32.totalorder %s33, 0
    %p165 = por %p163, %p164
    %s167 = sadd.s32 %s166, 1
    %p170 = scmp.eq.s32.totalorder %s27, 1
    %p171 = scmp.ne.s32.totalorder %s166, %s168
    %p172 = scmp.eq.s32.totalorder %s27, 0
    %p173 = por %p171, %p172
    %p174 = scmp.ne.s32.totalorder %s166, %s168
    %p175 = scmp.eq.s32.totalorder %s32, 1
    %p176 = por %p174, %p175
    %p177 = scmp.ne.s32.totalorder %s168, %s169
    %p178 = scmp.eq.s32.totalorder %s32, 0
    %p179 = por %p177, %p178
    %p180 = scmp.ne.s32.totalorder %s168, %s169
    %p181 = scmp.eq.s32.totalorder %s33, 1
    %p182 = por %p180, %p181
    %p184 = scmp.ne.s32.totalorder %s169, %s183
    %p185 = scmp.eq.s32.totalorder %s33, 0
    %p186 = por %p184, %p185
    %s188 = sadd.s32 %s187, 1
    %p191 = scmp.eq.s32.totalorder %s27, 1
    %p192 = scmp.ne.s32.totalorder %s187, %s189
    %p193 = scmp.eq.s32.totalorder %s27, 0
    %p194 = por %p192, %p193
    %p195 = scmp.ne.s32.totalorder %s187, %s189
    %p196 = scmp.eq.s32.totalorder %s32, 1
    %p197 = por %p195, %p196
    %p198 = scmp.ne.s32.totalorder %s189, %s190
    %p199 = scmp.eq.s32.totalorder %s32, 0
    %p200 = por %p198, %p199
    %p201 = scmp.ne.s32.totalorder %s189, %s190
    %p202 = scmp.eq.s32.totalorder %s33, 1
    %p203 = por %p201, %p202
    %p205 = scmp.ne.s32.totalorder %s190, %s204
    %p206 = scmp.eq.s32.totalorder %s33, 0
    %p207 = por %p205, %p206
    %s209 = sadd.s32 %s208, 1
    %p212 = scmp.eq.s32.totalorder %s27, 1
    %p213 = scmp.ne.s32.totalorder %s208, %s210
    %p214 = scmp.eq.s32.totalorder %s27, 0
    %p215 = por %p213, %p214
    %p216 = scmp.ne.s32.totalorder %s208, %s210
    %p217 = scmp.eq.s32.totalorder %s32, 1
    %p218 = por %p216, %p217
    %p219 = scmp.ne.s32.totalorder %s210, %s211
    %p220 = scmp.eq.s32.totalorder %s32, 0
    %p221 = por %p219, %p220
    %p222 = scmp.ne.s32.totalorder %s210, %s211
    %p223 = scmp.eq.s32.totalorder %s33, 1
    %p224 = por %p222, %p223
    %p226 = scmp.ne.s32.totalorder %s211, %s225
    %p227 = scmp.eq.s32.totalorder %s33, 0
    %p228 = por %p226, %p227
    %s230 = sadd.s32 %s229, 1
    %p233 = scmp.eq.s32.totalorder %s27, 1
    %p234 = scmp.ne.s32.totalorder %s229, %s231
    %p235 = scmp.eq.s32.totalorder %s27, 0
    %p236 = por %p234, %p235
    %p237 = scmp.ne.s32.totalorder %s229, %s231
    %p238 = scmp.eq.s32.totalorder %s32, 1
    %p239 = por %p237, %p238
    %p240 = scmp.ne.s32.totalorder %s231, %s232
    %p241 = scmp.eq.s32.totalorder %s32, 0
    %p242 = por %p240, %p241
    %p243 = scmp.ne.s32.totalorder %s231, %s232
    %p244 = scmp.eq.s32.totalorder %s33, 1
    %p245 = por %p243, %p244
    %p247 = scmp.ne.s32.totalorder %s232, %s246
    %p248 = scmp.eq.s32.totalorder %s33, 0
    %p249 = por %p247, %p248
    %s251 = sadd.s32 %s250, 1
    %p254 = scmp.eq.s32.totalorder %s27, 1
    %p255 = scmp.ne.s32.totalorder %s250, %s252
    %p256 = scmp.eq.s32.totalorder %s27, 0
    %p257 = por %p255, %p256
    %p258 = scmp.ne.s32.totalorder %s250, %s252
    %p259 = scmp.eq.s32.totalorder %s32, 1
    %p260 = por %p258, %p259
    %p261 = scmp.ne.s32.totalorder %s252, %s253
    %p262 = scmp.eq.s32.totalorder %s32, 0
    %p263 = por %p261, %p262
    %p264 = scmp.ne.s32.totalorder %s252, %s253
    %p265 = scmp.eq.s32.totalorder %s33, 1
    %p266 = por %p264, %p265
    %p268 = scmp.ne.s32.totalorder %s253, %s267
    %p269 = scmp.eq.s32.totalorder %s33, 0
    %p270 = por %p268, %p269
    %s272 = sadd.s32 %s271, 1
    %p275 = scmp.eq.s32.totalorder %s27, 1
    %p276 = scmp.ne.s32.totalorder %s271, %s273
    %p277 = scmp.eq.s32.totalorder %s27, 0
    %p278 = por %p276, %p277
    %p279 = scmp.ne.s32.totalorder %s271, %s273
    %p280 = scmp.eq.s32.totalorder %s32, 1
    %p281 = por %p279, %p280
    %p282 = scmp.ne.s32.totalorder %s273, %s274
    %p283 = scmp.eq.s32.totalorder %s32, 0
    %p284 = por %p282, %p283
    %p285 = scmp.ne.s32.totalorder %s273, %s274
    %p286 = scmp.eq.s32.totalorder %s33, 1
    %p287 = por %p285, %p286
    %p289 = scmp.ne.s32.totalorder %s274, %s288
    %p290 = scmp.eq.s32.totalorder %s33, 0
    %p291 = por %p289, %p290
    %s293 = sadd.s32 %s292, 1
    %p296 = scmp.eq.s32.totalorder %s27, 1
    %p297 = scmp.ne.s32.totalorder %s292, %s294
    %p298 = scmp.eq.s32.totalorder %s27, 0
    %p299 = por %p297, %p298
    %p300 = scmp.ne.s32.totalorder %s292, %s294
    %p301 = scmp.eq.s32.totalorder %s32, 1
    %p302 = por %p300, %p301
    %p303 = scmp.ne.s32.totalorder %s294, %s295
    %p304 = scmp.eq.s32.totalorder %s32, 0
    %p305 = por %p303, %p304
    %p306 = scmp.ne.s32.totalorder %s294, %s295
    %p307 = scmp.eq.s32.totalorder %s33, 1
    %p308 = por %p306, %p307
    %p310 = scmp.ne.s32.totalorder %s295, %s309
    %p311 = scmp.eq.s32.totalorder %s33, 0
    %p312 = por %p310, %p311
    %s314 = sadd.s32 %s313, 1
    %p317 = scmp.eq.s32.totalorder %s27, 1
    %p318 = scmp.ne.s32.totalorder %s313, %s315
    %p319 = scmp.eq.s32.totalorder %s27, 0
    %p320 = por %p318, %p319
    %p321 = scmp.ne.s32.totalorder %s313, %s315
    %p322 = scmp.eq.s32.totalorder %s32, 1
    %p323 = por %p321, %p322
    %p324 = scmp.ne.s32.totalorder %s315, %s316
    %p325 = scmp.eq.s32.totalorder %s32, 0
    %p326 = por %p324, %p325
    %p327 = scmp.ne.s32.totalorder %s315, %s316
    %p328 = scmp.eq.s32.totalorder %s33, 1
    %p329 = por %p327, %p328
    %p331 = scmp.ne.s32.totalorder %s316, %s330
    %p332 = scmp.eq.s32.totalorder %s33, 0
    %p333 = por %p331, %p332
    %s335 = sadd.s32 %s334, 1
    %p338 = scmp.eq.s32.totalorder %s27, 1
    %p339 = scmp.ne.s32.totalorder %s334, %s336
    %p340 = scmp.eq.s32.totalorder %s27, 0
    %p341 = por %p339, %p340
    %p342 = scmp.ne.s32.totalorder %s334, %s336
    %p343 = scmp.eq.s32.totalorder %s32, 1
    %p344 = por %p342, %p343
    %p345 = scmp.ne.s32.totalorder %s336, %s337
    %p346 = scmp.eq.s32.totalorder %s32, 0
    %p347 = por %p345, %p346
    %p348 = scmp.ne.s32.totalorder %s336, %s337
    %p349 = scmp.eq.s32.totalorder %s33, 1
    %p350 = por %p348, %p349
    %p352 = scmp.ne.s32.totalorder %s337, %s351
    %p353 = scmp.eq.s32.totalorder %s33, 0
    %p354 = por %p352, %p353
    %s356 = sadd.s32 %s355, 1
    %p359 = scmp.eq.s32.totalorder %s27, 1
    %p360 = scmp.ne.s32.totalorder %s355, %s357
    %p361 = scmp.eq.s32.totalorder %s27, 0
    %p362 = por %p360, %p361
    %p363 = scmp.ne.s32.totalorder %s355, %s357
    %p364 = scmp.eq.s32.totalorder %s32, 1
    %p365 = por %p363, %p364
    %p366 = scmp.ne.s32.totalorder %s357, %s358
    %p367 = scmp.eq.s32.totalorder %s32, 0
    %p368 = por %p366, %p367
    %p369 = scmp.ne.s32.totalorder %s357, %s358
    %p370 = scmp.eq.s32.totalorder %s33, 1
    %p371 = por %p369, %p370
    %p373 = scmp.ne.s32.totalorder %s358, %s372
    %p374 = scmp.eq.s32.totalorder %s33, 0
    %p375 = por %p373, %p374
    %s377 = sadd.s32 %s376, 1
    %p380 = scmp.eq.s32.totalorder %s27, 1
    %p381 = scmp.ne.s32.totalorder %s376, %s378
    %p382 = scmp.eq.s32.totalorder %s27, 0
    %p383 = por %p381, %p382
    %p384 = scmp.ne.s32.totalorder %s376, %s378
    %p385 = scmp.eq.s32.totalorder %s32, 1
    %p386 = por %p384, %p385
    %p387 = scmp.ne.s32.totalorder %s378, %s379
    %p388 = scmp.eq.s32.totalorder %s32, 0
    %p389 = por %p387, %p388
    %p390 = scmp.ne.s32.totalorder %s378, %s379
    %p391 = scmp.eq.s32.totalorder %s33, 1
    %p392 = por %p390, %p391
    %p394 = scmp.ne.s32.totalorder %s379, %s393
    %p395 = scmp.eq.s32.totalorder %s33, 0
    %p396 = por %p394, %p395
    %s397 = ssub.s32 %s27, %s34
    %p398 = scmp.eq.s32.totalorder %s397, 0
    %s400 = sadd.s32 %s399, 1
    %s401 = scalar_select %p398, %s399, %s400
    %p404 = pneg %p398
    %p405 = scmp.eq.s32.totalorder %s27, 1
    %p406 = por %p404, %p405
    %p407 = scmp.ne.s32.totalorder %s399, %s402
    %p408 = scmp.eq.s32.totalorder %s27, 0
    %p409 = por %p407, %p408
    %p410 = scmp.ne.s32.totalorder %s399, %s402
    %p411 = scmp.eq.s32.totalorder %s32, 1
    %p412 = por %p410, %p411
    %p413 = scmp.ne.s32.totalorder %s402, %s403
    %p414 = scmp.eq.s32.totalorder %s32, 0
    %p415 = por %p413, %p414
    %p416 = scmp.ne.s32.totalorder %s402, %s403
    %p417 = scmp.eq.s32.totalorder %s33, 1
    %p418 = por %p416, %p417
    %p420 = scmp.ne.s32.totalorder %s403, %s419
    %p421 = scmp.eq.s32.totalorder %s33, 0
    %p422 = por %p420, %p421
    %p423 = scmp.le.s32.totalorder 1, %s27
    %p424 = scmp.lt.s32.totalorder %s27, 3
    %p425 = pnand %p423, %p424
    %p426 = pneg %p425
    // Predicated region
    $region9: #{down_pallas.1} parent=5 // pred_check
      _
    $region10: #{down_pallas.1} parent=5 // pred_check_branch
      %428 = sbr.rel (%p425) target = $region12
    $region11: #{down_pallas.1} parent=5 // pred_region
      %s429 = ssub.s32 %s27, 1
      // Predicated region
      $region13: #{down_pallas.1} parent=11 // pred_check
        %p430 = pneg %p74
      $region14: #{down_pallas.1} parent=11 // pred_check_branch
        %432 = sbr.rel (%p430) target = $region16
      $region15: #{down_pallas.1} parent=11 // pred_region
        _
      $region16: #{down_pallas.1} parent=11 // pred_fallthru
        _
      // Predicated region
      $region17: #{down_pallas.1} parent=11 // pred_check
        %p433 = pneg %p95
      $region18: #{down_pallas.1} parent=11 // pred_check_branch
        %435 = sbr.rel (%p433) target = $region20
      $region19: #{down_pallas.1} parent=11 // pred_region
        _
      $region20: #{down_pallas.1} parent=11 // pred_fallthru
        _
      // Predicated region
      $region21: #{down_pallas.1} parent=11 // pred_check
        %p436 = pneg %p116
      $region22: #{down_pallas.1} parent=11 // pred_check_branch
        %438 = sbr.rel (%p436) target = $region24
      $region23: #{down_pallas.1} parent=11 // pred_region
        _
      $region24: #{down_pallas.1} parent=11 // pred_fallthru
        _
      // Predicated region
      $region25: #{down_pallas.1} parent=11 // pred_check
        %p439 = pneg %p137
      $region26: #{down_pallas.1} parent=11 // pred_check_branch
        %441 = sbr.rel (%p439) target = $region28
      $region27: #{down_pallas.1} parent=11 // pred_region
        _
      $region28: #{down_pallas.1} parent=11 // pred_fallthru
        _
      // Predicated region
      $region29: #{down_pallas.1} parent=11 // pred_check
        %p442 = pneg %p158
      $region30: #{down_pallas.1} parent=11 // pred_check_branch
        %444 = sbr.rel (%p442) target = $region32
      $region31: #{down_pallas.1} parent=11 // pred_region
        _
      $region32: #{down_pallas.1} parent=11 // pred_fallthru
        _
      // Predicated region
      $region33: #{down_pallas.1} parent=11 // pred_check
        %p445 = pneg %p179
      $region34: #{down_pallas.1} parent=11 // pred_check_branch
        %447 = sbr.rel (%p445) target = $region36
      $region35: #{down_pallas.1} parent=11 // pred_region
        _
      $region36: #{down_pallas.1} parent=11 // pred_fallthru
        _
      // Predicated region
      $region37: #{down_pallas.1} parent=11 // pred_check
        %p448 = pneg %p200
      $region38: #{down_pallas.1} parent=11 // pred_check_branch
        %450 = sbr.rel (%p448) target = $region40
      $region39: #{down_pallas.1} parent=11 // pred_region
        _
      $region40: #{down_pallas.1} parent=11 // pred_fallthru
        _
      // Predicated region
      $region41: #{down_pallas.1} parent=11 // pred_check
        %p451 = pneg %p221
      $region42: #{down_pallas.1} parent=11 // pred_check_branch
        %453 = sbr.rel (%p451) target = $region44
      $region43: #{down_pallas.1} parent=11 // pred_region
        _
      $region44: #{down_pallas.1} parent=11 // pred_fallthru
        _
      // Predicated region
      $region45: #{down_pallas.1} parent=11 // pred_check
        %p454 = pneg %p242
      $region46: #{down_pallas.1} parent=11 // pred_check_branch
        %456 = sbr.rel (%p454) target = $region48
      $region47: #{down_pallas.1} parent=11 // pred_region
        _
      $region48: #{down_pallas.1} parent=11 // pred_fallthru
        _
      // Predicated region
      $region49: #{down_pallas.1} parent=11 // pred_check
        %p457 = pneg %p263
      $region50: #{down_pallas.1} parent=11 // pred_check_branch
        %459 = sbr.rel (%p457) target = $region52
      $region51: #{down_pallas.1} parent=11 // pred_region
        _
      $region52: #{down_pallas.1} parent=11 // pred_fallthru
        _
      // Predicated region
      $region53: #{down_pallas.1} parent=11 // pred_check
        %p460 = pneg %p284
      $region54: #{down_pallas.1} parent=11 // pred_check_branch
        %462 = sbr.rel (%p460) target = $region56
      $region55: #{down_pallas.1} parent=11 // pred_region
        _
      $region56: #{down_pallas.1} parent=11 // pred_fallthru
        _
      // Predicated region
      $region57: #{down_pallas.1} parent=11 // pred_check
        %p463 = pneg %p305
      $region58: #{down_pallas.1} parent=11 // pred_check_branch
        %465 = sbr.rel (%p463) target = $region60
      $region59: #{down_pallas.1} parent=11 // pred_region
        _
      $region60: #{down_pallas.1} parent=11 // pred_fallthru
        _
      // Predicated region
      $region61: #{down_pallas.1} parent=11 // pred_check
        %p466 = pneg %p326
      $region62: #{down_pallas.1} parent=11 // pred_check_branch
        %468 = sbr.rel (%p466) target = $region64
      $region63: #{down_pallas.1} parent=11 // pred_region
        _
      $region64: #{down_pallas.1} parent=11 // pred_fallthru
        _
      // Predicated region
      $region65: #{down_pallas.1} parent=11 // pred_check
        %p469 = pneg %p347
      $region66: #{down_pallas.1} parent=11 // pred_check_branch
        %471 = sbr.rel (%p469) target = $region68
      $region67: #{down_pallas.1} parent=11 // pred_region
        _
      $region68: #{down_pallas.1} parent=11 // pred_fallthru
        _
      // Predicated region
      $region69: #{down_pallas.1} parent=11 // pred_check
        %p472 = pneg %p368
      $region70: #{down_pallas.1} parent=11 // pred_check_branch
        %474 = sbr.rel (%p472) target = $region72
      $region71: #{down_pallas.1} parent=11 // pred_region
        _
      $region72: #{down_pallas.1} parent=11 // pred_fallthru
        _
      // Predicated region
      $region73: #{down_pallas.1} parent=11 // pred_check
        %p475 = pneg %p389
      $region74: #{down_pallas.1} parent=11 // pred_check_branch
        %477 = sbr.rel (%p475) target = $region76
      $region75: #{down_pallas.1} parent=11 // pred_region
        _
      $region76: #{down_pallas.1} parent=11 // pred_fallthru
        _
    $region12: #{down_pallas.1} parent=5 // pred_fallthru
      _
    %p478 = scmp.lt.s32.totalorder %s27, 2
    // Predicated region
    $region77: #{down_pallas.1} parent=5 // pred_check
      %p479 = pneg %p478
    $region78: #{down_pallas.1} parent=5 // pred_check_branch
      %481 = sbr.rel (%p479) target = $region80
    $region79: #{down_pallas.1} parent=5 // pred_region
      // Predicated region
      $region81: #{down_pallas.1} parent=79 // pred_check
        %p482 = pneg %p47
      $region82: #{down_pallas.1} parent=79 // pred_check_branch
        %484 = sbr.rel (%p482) target = $region84
      $region83: #{down_pallas.1} parent=79 // pred_region
        %p485 = scmp.lt.s32.totalorder %s27, 1
        %s486 = scalar_select %p485, %s27, 1
        %s487 = smul.addr %s486, 32
        %s488 = smul.addr %s487, 8
        %s489 = scalar_lea.vmem %s0, %s488
      $region84: #{down_pallas.1} parent=79 // pred_fallthru
        _
    $region80: #{down_pallas.1} parent=5 // pred_fallthru
      _
    %p490 = scmp.le.s32.totalorder 1, %s27
    %p491 = scmp.lt.s32.totalorder %s27, 3
    %p492 = pnand %p490, %p491
    %p493 = pneg %p492
    // Predicated region
    $region85: #{down_pallas.1} parent=5 // pred_check
      _
    $region86: #{down_pallas.1} parent=5 // pred_check_branch
      %495 = sbr.rel (%p492) target = $region88
    $region87: #{down_pallas.1} parent=5 // pred_region
      %s496 = ssub.s32 %s27, 1
      %p497 = scmp.lt.s32.totalorder %s32, 1
      %s498 = scalar_select %p497, %s32, 1
      %s499 = smul.addr %s498, 32
      %s500 = smul.addr %s499, 8
      %s501 = scalar_lea.vmem %s0, %s500
      %p502 = pneg %p53
      %p503 = pneg %p50
      %p504 = pneg %p74
      %p505 = pneg %p71
      %p506 = pneg %p95
      %p507 = pneg %p92
      %p508 = pneg %p116
      %p509 = pneg %p113
      %p510 = pneg %p137
      %p511 = pneg %p134
      %p512 = pneg %p158
      %p513 = pneg %p155
      %p514 = pneg %p179
      %p515 = pneg %p176
      %p516 = pneg %p200
      %p517 = pneg %p197
      %p518 = pneg %p221
      %p519 = pneg %p218
      %p520 = pneg %p242
      %p521 = pneg %p239
      %p522 = pneg %p263
      %p523 = pneg %p260
      %p524 = pneg %p284
      %p525 = pneg %p281
      %p526 = pneg %p305
      %p527 = pneg %p302
      %p528 = pneg %p326
      %p529 = pneg %p323
      %p530 = pneg %p347
      %p531 = pneg %p344
      %p532 = pneg %p368
      %p533 = pneg %p365
      %p534 = pneg %p389
      %p535 = pneg %p386
      %p536 = pneg %p415
      %p537 = pneg %p412
      %p538 = scmp.lt.s32.totalorder %s32, 1
      %s539 = scalar_select %p538, %s32, 1
      %s540 = smul.addr %s539, 8
      %s541 = smul.addr %s540, 8
      %s542 = scalar_lea.vmem %s17, %s541
      %p543 = scmp.lt.s32.totalorder %s32, 1
      %s544 = scalar_select %p543, %s32, 1
      %s545 = smul.addr %s544, 32
      %s546 = smul.addr %s545, 8
      %s547 = scalar_lea.vmem %s0, %s546
      %p548 = scmp.lt.s32.totalorder %s32, 1
      %s549 = scalar_select %p548, %s32, 1
      %s550 = smul.addr %s549, 8
      %s551 = smul.addr %s550, 8
      %s552 = scalar_lea.vmem %s17, %s551
      %v553 = vld [vmem:[%s1] sm:$0xff]
      %v554 = vld [vmem:[%s1 + $0x8] sm:$0xff]
      %v555 = vld [vmem:[%s1 + $0x10] sm:$0xff]
      %v556 = vld [vmem:[%s1 + $0x18] sm:$0xff]
      %v557 = vld [vmem:[%s1 + $0x20] sm:$0xff]
      %v558 = vld [vmem:[%s1 + $0x28] sm:$0xff]
      %v559 = vld [vmem:[%s1 + $0x30] sm:$0xff]
      %v560 = vld [vmem:[%s1 + $0x38] sm:$0xff]
      %v561 = vld [vmem:[%s1 + $0x40] sm:$0xff]
      %v562 = vld [vmem:[%s1 + $0x48] sm:$0xff]
      %v563 = vld [vmem:[%s1 + $0x50] sm:$0xff]
      %v564 = vld [vmem:[%s1 + $0x58] sm:$0xff]
      %v565 = vld [vmem:[%s1 + $0x60] sm:$0xff]
      %v566 = vld [vmem:[%s1 + $0x68] sm:$0xff]
      %v567 = vld [vmem:[%s1 + $0x70] sm:$0xff]
      %v568 = vld [vmem:[%s1 + $0x78] sm:$0xff]
      %v569 = vld [vmem:[%s1 + $0x80] sm:$0xff]
      %v570 = vld [vmem:[%s1 + $0x88] sm:$0xff]
      %v571 = vld [vmem:[%s2] sm:$0x1]
      %v572 = vld [vmem:[%s3] sm:$0x1]
      %v573 = vld [vmem:[%s4] sm:$0x1]
      %v574 = vld [vmem:[%s5] sm:$0xff]
      %v575 = vld [vmem:[%s5 + $0x8] sm:$0xff]
      %v576 = vld [vmem:[%s5 + $0x10] sm:$0xff]
      %v577 = vld [vmem:[%s5 + $0x18] sm:$0xff]
      %v578 = vld [vmem:[%s5 + $0x20] sm:$0xff]
      %v579 = vld [vmem:[%s5 + $0x28] sm:$0xff]
      %v580 = vld [vmem:[%s5 + $0x30] sm:$0xff]
      %v581 = vld [vmem:[%s5 + $0x38] sm:$0xff]
      %v582 = vld [vmem:[%s5 + $0x40] sm:$0xff]
      %v583 = vld [vmem:[%s5 + $0x48] sm:$0xff]
      %v584 = vld [vmem:[%s5 + $0x50] sm:$0xff]
      %v585 = vld [vmem:[%s5 + $0x58] sm:$0xff]
      %v586 = vld [vmem:[%s5 + $0x60] sm:$0xff]
      %v587 = vld [vmem:[%s5 + $0x68] sm:$0xff]
      %v588 = vld [vmem:[%s5 + $0x70] sm:$0xff]
      %v589 = vld [vmem:[%s5 + $0x78] sm:$0xff]
      %v590 = vld [vmem:[%s5 + $0x80] sm:$0xff]
      %v591 = vld [vmem:[%s5 + $0x88] sm:$0xff]
      %v592 = vld [vmem:[%s6] sm:$0x1]
      %v593 = vld [vmem:[%s7] sm:$0x1]
      %v594 = vld [vmem:[%s8] sm:$0x1]
      %v595 = vld [vmem:[%s9] sm:$0xff]
      %v596 = vld [vmem:[%s9 + $0x8] sm:$0xff]
      %v597 = vld [vmem:[%s9 + $0x10] sm:$0xff]
      %v598 = vld [vmem:[%s9 + $0x18] sm:$0xff]
      %v599 = vld [vmem:[%s10] sm:$0x1]
      %v600 = vld [vmem:[%s11] sm:$0x3]
      %v601 = vld [vmem:[%s12] sm:$0x1]
      %v602 = vld [vmem:[#allocation2] sm:$0x1]
      %v603 = vld [vmem:[#allocation3] sm:$0x1]
      %v604 = vld [vmem:[%s15] sm:$0xff]
      %v605 = vld [vmem:[%s15 + $0x8] sm:$0xff]
      %v606 = vld [vmem:[%s16] sm:$0x1]
      %v607 = vld [vmem:[%s547] sm:$0xff]
      %v608 = vld [vmem:[%s547 + $0x8] sm:$0xff]
      %v609 = vld [vmem:[%s547 + $0x10] sm:$0xff]
      %v610 = vld [vmem:[%s547 + $0x18] sm:$0xff]
      %v611 = vld [vmem:[%s547 + $0x20] sm:$0xff]
      %v612 = vld [vmem:[%s547 + $0x28] sm:$0xff]
      %v613 = vld [vmem:[%s547 + $0x30] sm:$0xff]
      %v614 = vld [vmem:[%s547 + $0x38] sm:$0xff]
      %v615 = vld [vmem:[%s547 + $0x40] sm:$0xff]
      %v616 = vld [vmem:[%s547 + $0x48] sm:$0xff]
      %v617 = vld [vmem:[%s547 + $0x50] sm:$0xff]
      %v618 = vld [vmem:[%s547 + $0x58] sm:$0xff]
      %v619 = vld [vmem:[%s547 + $0x60] sm:$0xff]
      %v620 = vld [vmem:[%s547 + $0x68] sm:$0xff]
      %v621 = vld [vmem:[%s547 + $0x70] sm:$0xff]
      %v622 = vld [vmem:[%s547 + $0x78] sm:$0xff]
      %v623 = vld [vmem:[%s547 + $0x80] sm:$0xff]
      %v624 = vld [vmem:[%s547 + $0x88] sm:$0xff]
      %v625 = vld [vmem:[%s547 + $0x90] sm:$0xff]
      %v626 = vld [vmem:[%s547 + $0x98] sm:$0xff]
      %v627 = vld [vmem:[%s547 + $0xa0] sm:$0xff]
      %v628 = vld [vmem:[%s547 + $0xa8] sm:$0xff]
      %v629 = vld [vmem:[%s547 + $0xb0] sm:$0xff]
      %v630 = vld [vmem:[%s547 + $0xb8] sm:$0xff]
      %v631 = vld [vmem:[%s547 + $0xc0] sm:$0xff]
      %v632 = vld [vmem:[%s547 + $0xc8] sm:$0xff]
      %v633 = vld [vmem:[%s547 + $0xd0] sm:$0xff]
      %v634 = vld [vmem:[%s547 + $0xd8] sm:$0xff]
      %v635 = vld [vmem:[%s547 + $0xe0] sm:$0xff]
      %v636 = vld [vmem:[%s547 + $0xe8] sm:$0xff]
      %v637 = vld [vmem:[%s547 + $0xf0] sm:$0xff]
      %v638 = vld [vmem:[%s547 + $0xf8] sm:$0xff]
      %v639 = vmax.f32 %v607, %v615
      %v640 = vmax.f32 %v608, %v616
      %v641 = vmax.f32 %v609, %v617
      %v642 = vmax.f32 %v610, %v618
      %v643 = vmax.f32 %v611, %v619
      %v644 = vmax.f32 %v612, %v620
      %v645 = vmax.f32 %v613, %v621
      %v646 = vmax.f32 %v614, %v622
      %v647 = vmax.f32 %v623, %v631
      %v648 = vmax.f32 %v624, %v632
      %v649 = vmax.f32 %v625, %v633
      %v650 = vmax.f32 %v626, %v634
      %v651 = vmax.f32 %v627, %v635
      %v652 = vmax.f32 %v628, %v636
      %v653 = vmax.f32 %v629, %v637
      %v654 = vmax.f32 %v630, %v638
      %v655 = vmax.f32 %v639, %v647
      %v656 = vmax.f32 %v640, %v648
      %v657 = vmax.f32 %v641, %v649
      %v658 = vmax.f32 %v642, %v650
      %v659 = vmax.f32 %v643, %v651
      %v660 = vmax.f32 %v644, %v652
      %v661 = vmax.f32 %v645, %v653
      %v662 = vmax.f32 %v646, %v654
      %v663 = vlaneseq
      %v664 = vshrl.u32 %v663, 7
      %v665 = vadd.s32 %v664, 8
      %v666 = vadd.s32 %v664, 16
      %v667 = vadd.s32 %v664, 24
      %v668 = vadd.s32 %v664, 32
      %v669 = vadd.s32 %v664, 40
      %v670 = vadd.s32 %v664, 48
      %v671 = vadd.s32 %v664, 56
      %vm672 = vcmp.lt.s32.totalorder %v664, 0
      %v673 = vsub.s32 0, %v664
      %v674 = vsel %vm672, %v673, %v664
      %v675 = vshrl.u32 %v674, 3
      %v676 = vand.u32 %v674, 7
      %v677 = vsub.s32 0, %v676
      %v678 = vsel %vm672, %v677, %v676
      %vm679 = vcmp.lt.s32.totalorder %v665, 0
      %v680 = vsub.s32 0, %v665
      %v681 = vsel %vm679, %v680, %v665
      %v682 = vshrl.u32 %v681, 3
      %v683 = vand.u32 %v681, 7
      %v684 = vsub.s32 0, %v683
      %v685 = vsel %vm679, %v684, %v683
      %vm686 = vcmp.lt.s32.totalorder %v666, 0
      %v687 = vsub.s32 0, %v666
      %v688 = vsel %vm686, %v687, %v666
      %v689 = vshrl.u32 %v688, 3
      %v690 = vand.u32 %v688, 7
      %v691 = vsub.s32 0, %v690
      %v692 = vsel %vm686, %v691, %v690
      %vm693 = vcmp.lt.s32.totalorder %v667, 0
      %v694 = vsub.s32 0, %v667
      %v695 = vsel %vm693, %v694, %v667
      %v696 = vshrl.u32 %v695, 3
      %v697 = vand.u32 %v695, 7
      %v698 = vsub.s32 0, %v697
      %v699 = vsel %vm693, %v698, %v697
      %vm700 = vcmp.lt.s32.totalorder %v668, 0
      %v701 = vsub.s32 0, %v668
      %v702 = vsel %vm700, %v701, %v668
      %v703 = vshrl.u32 %v702, 3
      %v704 = vand.u32 %v702, 7
      %v705 = vsub.s32 0, %v704
      %v706 = vsel %vm700, %v705, %v704
      %vm707 = vcmp.lt.s32.totalorder %v669, 0
      %v708 = vsub.s32 0, %v669
      %v709 = vsel %vm707, %v708, %v669
      %v710 = vshrl.u32 %v709, 3
      %v711 = vand.u32 %v709, 7
      %v712 = vsub.s32 0, %v711
      %v713 = vsel %vm707, %v712, %v711
      %vm714 = vcmp.lt.s32.totalorder %v670, 0
      %v715 = vsub.s32 0, %v670
      %v716 = vsel %vm714, %v715, %v670
      %v717 = vshrl.u32 %v716, 3
      %v718 = vand.u32 %v716, 7
      %v719 = vsub.s32 0, %v718
      %v720 = vsel %vm714, %v719, %v718
      %vm721 = vcmp.lt.s32.totalorder %v671, 0
      %v722 = vsub.s32 0, %v671
      %v723 = vsel %vm721, %v722, %v671
      %v724 = vshrl.u32 %v723, 3
      %v725 = vand.u32 %v723, 7
      %v726 = vsub.s32 0, %v725
      %v727 = vsel %vm721, %v726, %v725
      %vm728 = vcmp.ne.s32.totalorder %v678, 0
      %vm729 = vcmp.ne.s32.totalorder %v685, 0
      %vm730 = vcmp.ne.s32.totalorder %v692, 0
      %vm731 = vcmp.ne.s32.totalorder %v699, 0
      %vm732 = vcmp.ne.s32.totalorder %v706, 0
      %vm733 = vcmp.ne.s32.totalorder %v713, 0
      %vm734 = vcmp.ne.s32.totalorder %v720, 0
      %vm735 = vcmp.ne.s32.totalorder %v727, 0
      %vm736 = vcmp.lt.s32.totalorder %v678, 0
      %vm737 = vcmp.lt.s32.totalorder %v685, 0
      %vm738 = vcmp.lt.s32.totalorder %v692, 0
      %vm739 = vcmp.lt.s32.totalorder %v699, 0
      %vm740 = vcmp.lt.s32.totalorder %v706, 0
      %vm741 = vcmp.lt.s32.totalorder %v713, 0
      %vm742 = vcmp.lt.s32.totalorder %v720, 0
      %vm743 = vcmp.lt.s32.totalorder %v727, 0
      %vm744 = vmand %vm736, %vm728
      %vm745 = vmand %vm737, %vm729
      %vm746 = vmand %vm738, %vm730
      %vm747 = vmand %vm739, %vm731
      %vm748 = vmand %vm740, %vm732
      %vm749 = vmand %vm741, %vm733
      %vm750 = vmand %vm742, %vm734
      %vm751 = vmand %vm743, %vm735
      %v752 = vadd.s32 %v678, 8
      %v753 = vadd.s32 %v685, 8
      %v754 = vadd.s32 %v692, 8
      %v755 = vadd.s32 %v699, 8
      %v756 = vadd.s32 %v706, 8
      %v757 = vadd.s32 %v713, 8
      %v758 = vadd.s32 %v720, 8
      %v759 = vadd.s32 %v727, 8
      %v760 = vsel %vm744, %v752, %v678
      %v761 = vsel %vm745, %v753, %v685
      %v762 = vsel %vm746, %v754, %v692
      %v763 = vsel %vm747, %v755, %v699
      %v764 = vsel %vm748, %v756, %v706
      %v765 = vsel %vm749, %v757, %v713
      %v766 = vsel %vm750, %v758, %v720
      %v767 = vsel %vm751, %v759, %v727
      %vm768 = vcmp.ge.s32.totalorder %v760, 1
      %vm769 = vcmp.ge.s32.totalorder %v761, 1
      %vm770 = vcmp.ge.s32.totalorder %v762, 1
      %vm771 = vcmp.ge.s32.totalorder %v763, 1
      %vm772 = vcmp.ge.s32.totalorder %v764, 1
      %vm773 = vcmp.ge.s32.totalorder %v765, 1
      %vm774 = vcmp.ge.s32.totalorder %v766, 1
      %vm775 = vcmp.ge.s32.totalorder %v767, 1
      %vm776 = vcmp.le.s32.totalorder %v760, 6
      %vm777 = vcmp.le.s32.totalorder %v761, 6
      %vm778 = vcmp.le.s32.totalorder %v762, 6
      %vm779 = vcmp.le.s32.totalorder %v763, 6
      %vm780 = vcmp.le.s32.totalorder %v764, 6
      %vm781 = vcmp.le.s32.totalorder %v765, 6
      %vm782 = vcmp.le.s32.totalorder %v766, 6
      %vm783 = vcmp.le.s32.totalorder %v767, 6
      %vm792 = vcmask 1040384
      %v793 = vrot.slane %v655, 7
      %v794 = vrot.slane %v656, 7
      %v795 = vsel %vm792, %v793, %v794
      %v796 = vrot.slane %v657, 7
      %v797 = vsel %vm792, %v794, %v796
      %v798 = vrot.slane %v658, 7
      %v799 = vsel %vm792, %v796, %v798
      %v800 = vrot.slane %v659, 7
      %v801 = vsel %vm792, %v798, %v800
      %v802 = vrot.slane %v660, 7
      %v803 = vsel %vm792, %v800, %v802
      %v804 = vrot.slane %v661, 7
      %v805 = vsel %vm792, %v802, %v804
      %v806 = vrot.slane %v662, 7
      %v807 = vsel %vm792, %v804, %v806
      %v816 = vsel %vm792, 0.0, %v793
      %v817 = vsel %vm768, 1, 0
      %v818 = vsel %vm769, 1, 0
      %v819 = vsel %vm770, 1, 0
      %v820 = vsel %vm771, 1, 0
      %v821 = vsel %vm772, 1, 0
      %v822 = vsel %vm773, 1, 0
      %v823 = vsel %vm774, 1, 0
      %v824 = vsel %vm775, 1, 0
      %vm825 = vcmp.eq.s32.totalorder %v817, 1
      %vm826 = vcmp.eq.s32.totalorder %v818, 1
      %vm827 = vcmp.eq.s32.totalorder %v819, 1
      %vm828 = vcmp.eq.s32.totalorder %v820, 1
      %vm829 = vcmp.eq.s32.totalorder %v821, 1
      %vm830 = vcmp.eq.s32.totalorder %v822, 1
      %vm831 = vcmp.eq.s32.totalorder %v823, 1
      %vm832 = vcmp.eq.s32.totalorder %v824, 1
      %v833 = vsel %vm825, %v816, 0.0
      %v834 = vsel %vm826, %v795, 0.0
      %v835 = vsel %vm827, %v797, 0.0
      %v836 = vsel %vm828, %v799, 0.0
      %v837 = vsel %vm829, %v801, 0.0
      %v838 = vsel %vm830, %v803, 0.0
      %v839 = vsel %vm831, %v805, 0.0
      %v840 = vsel %vm832, %v807, 0.0
      %vm841 = vcmask 1046528
      %v842 = vrot.slane %v655, 1
      %v843 = vrot.slane %v656, 1
      %v844 = vsel %vm841, %v842, %v843
      %v845 = vrot.slane %v657, 1
      %v846 = vsel %vm841, %v843, %v845
      %v847 = vrot.slane %v658, 1
      %v848 = vsel %vm841, %v845, %v847
      %v849 = vrot.slane %v659, 1
      %v850 = vsel %vm841, %v847, %v849
      %v851 = vrot.slane %v660, 1
      %v852 = vsel %vm841, %v849, %v851
      %v853 = vrot.slane %v661, 1
      %v854 = vsel %vm841, %v851, %v853
      %v855 = vrot.slane %v662, 1
      %v856 = vsel %vm841, %v853, %v855
      %v865 = vsel %vm841, %v855, 0.0
      %v866 = vsel %vm776, 1, 0
      %v867 = vsel %vm777, 1, 0
      %v868 = vsel %vm778, 1, 0
      %v869 = vsel %vm779, 1, 0
      %v870 = vsel %vm780, 1, 0
      %v871 = vsel %vm781, 1, 0
      %v872 = vsel %vm782, 1, 0
      %v873 = vsel %vm783, 1, 0
      %vm874 = vcmp.eq.s32.totalorder %v866, 1
      %vm875 = vcmp.eq.s32.totalorder %v867, 1
      %vm876 = vcmp.eq.s32.totalorder %v868, 1
      %vm877 = vcmp.eq.s32.totalorder %v869, 1
      %vm878 = vcmp.eq.s32.totalorder %v870, 1
      %vm879 = vcmp.eq.s32.totalorder %v871, 1
      %vm880 = vcmp.eq.s32.totalorder %v872, 1
      %vm881 = vcmp.eq.s32.totalorder %v873, 1
      %v882 = vsel %vm874, %v844, 0.0
      %v883 = vsel %vm875, %v846, 0.0
      %v884 = vsel %vm876, %v848, 0.0
      %v885 = vsel %vm877, %v850, 0.0
      %v886 = vsel %vm878, %v852, 0.0
      %v887 = vsel %vm879, %v854, 0.0
      %v888 = vsel %vm880, %v856, 0.0
      %v889 = vsel %vm881, %v865, 0.0
      %891 = vrot.lane.b32.xlu0 0.0, 16
      %v892 = vpop.permute.xlu0 %891
      %893 = vrot.lane.b32.xlu0 %v655, 16
      %v894 = vpop.permute.xlu0 %893
      %895 = vrot.lane.b32.xlu0 %v656, 16
      %v896 = vpop.permute.xlu0 %895
      %897 = vrot.lane.b32.xlu0 %v657, 16
      %v898 = vpop.permute.xlu0 %897
      %899 = vrot.lane.b32.xlu0 %v658, 16
      %v900 = vpop.permute.xlu0 %899
      %901 = vrot.lane.b32.xlu0 %v659, 16
      %v902 = vpop.permute.xlu0 %901
      %903 = vrot.lane.b32.xlu0 %v660, 16
      %v904 = vpop.permute.xlu0 %903
      %905 = vrot.lane.b32.xlu0 %v661, 16
      %v906 = vpop.permute.xlu0 %905
      %922 = vrot.lane.b32.xlu0 0.0, 32
      %v923 = vpop.permute.xlu0 %922
      %924 = vrot.lane.b32.xlu0 %v882, 32
      %v925 = vpop.permute.xlu0 %924
      %926 = vrot.lane.b32.xlu0 %v883, 32
      %v927 = vpop.permute.xlu0 %926
      %928 = vrot.lane.b32.xlu0 %v884, 32
      %v929 = vpop.permute.xlu0 %928
      %930 = vrot.lane.b32.xlu0 %v885, 32
      %v931 = vpop.permute.xlu0 %930
      %932 = vrot.lane.b32.xlu0 %v886, 32
      %v933 = vpop.permute.xlu0 %932
      %934 = vrot.lane.b32.xlu0 %v887, 32
      %v935 = vpop.permute.xlu0 %934
      %936 = vrot.lane.b32.xlu0 %v888, 32
      %v937 = vpop.permute.xlu0 %936
      %954 = vrot.lane.b32.xlu0 %v833, 48
      %v955 = vpop.permute.xlu0 %954
      %956 = vrot.lane.b32.xlu0 %v834, 48
      %v957 = vpop.permute.xlu0 %956
      %958 = vrot.lane.b32.xlu0 %v835, 48
      %v959 = vpop.permute.xlu0 %958
      %960 = vrot.lane.b32.xlu0 %v836, 48
      %v961 = vpop.permute.xlu0 %960
      %962 = vrot.lane.b32.xlu0 %v837, 48
      %v963 = vpop.permute.xlu0 %962
      %964 = vrot.lane.b32.xlu0 %v838, 48
      %v965 = vpop.permute.xlu0 %964
      %966 = vrot.lane.b32.xlu0 %v839, 48
      %v967 = vpop.permute.xlu0 %966
      %968 = vrot.lane.b32.xlu0 %v840, 48
      %v969 = vpop.permute.xlu0 %968
      %978 = vrot.lane.b32.xlu0 %v655, 64
      %v979 = vpop.permute.xlu0 %978
      %980 = vrot.lane.b32.xlu0 %v656, 64
      %v981 = vpop.permute.xlu0 %980
      %982 = vrot.lane.b32.xlu0 %v657, 64
      %v983 = vpop.permute.xlu0 %982
      %984 = vrot.lane.b32.xlu0 %v658, 64
      %v985 = vpop.permute.xlu0 %984
      %986 = vrot.lane.b32.xlu0 %v659, 64
      %v987 = vpop.permute.xlu0 %986
      %988 = vrot.lane.b32.xlu0 %v660, 64
      %v989 = vpop.permute.xlu0 %988
      %990 = vrot.lane.b32.xlu0 %v661, 64
      %v991 = vpop.permute.xlu0 %990
      %992 = vrot.lane.b32.xlu0 %v662, 64
      %v993 = vpop.permute.xlu0 %992
      %1003 = vrot.lane.b32.xlu0 %v882, 80
      %v1004 = vpop.permute.xlu0 %1003
      %1005 = vrot.lane.b32.xlu0 %v883, 80
      %v1006 = vpop.permute.xlu0 %1005
      %1007 = vrot.lane.b32.xlu0 %v884, 80
      %v1008 = vpop.permute.xlu0 %1007
      %1009 = vrot.lane.b32.xlu0 %v885, 80
      %v1010 = vpop.permute.xlu0 %1009
      %1011 = vrot.lane.b32.xlu0 %v886, 80
      %v1012 = vpop.permute.xlu0 %1011
      %1013 = vrot.lane.b32.xlu0 %v887, 80
      %v1014 = vpop.permute.xlu0 %1013
      %1015 = vrot.lane.b32.xlu0 %v888, 80
      %v1016 = vpop.permute.xlu0 %1015
      %1017 = vrot.lane.b32.xlu0 %v889, 80
      %v1018 = vpop.permute.xlu0 %1017
      %1027 = vrot.lane.b32.xlu0 %v834, 96
      %v1028 = vpop.permute.xlu0 %1027
      %1029 = vrot.lane.b32.xlu0 %v835, 96
      %v1030 = vpop.permute.xlu0 %1029
      %1031 = vrot.lane.b32.xlu0 %v836, 96
      %v1032 = vpop.permute.xlu0 %1031
      %1033 = vrot.lane.b32.xlu0 %v837, 96
      %v1034 = vpop.permute.xlu0 %1033
      %1035 = vrot.lane.b32.xlu0 %v838, 96
      %v1036 = vpop.permute.xlu0 %1035
      %1037 = vrot.lane.b32.xlu0 %v839, 96
      %v1038 = vpop.permute.xlu0 %1037
      %1039 = vrot.lane.b32.xlu0 %v840, 96
      %v1040 = vpop.permute.xlu0 %1039
      %1041 = vrot.lane.b32.xlu0 0.0, 96
      %v1042 = vpop.permute.xlu0 %1041
      %1051 = vrot.lane.b32.xlu0 %v656, 112
      %v1052 = vpop.permute.xlu0 %1051
      %1053 = vrot.lane.b32.xlu0 %v657, 112
      %v1054 = vpop.permute.xlu0 %1053
      %1055 = vrot.lane.b32.xlu0 %v658, 112
      %v1056 = vpop.permute.xlu0 %1055
      %1057 = vrot.lane.b32.xlu0 %v659, 112
      %v1058 = vpop.permute.xlu0 %1057
      %1059 = vrot.lane.b32.xlu0 %v660, 112
      %v1060 = vpop.permute.xlu0 %1059
      %1061 = vrot.lane.b32.xlu0 %v661, 112
      %v1062 = vpop.permute.xlu0 %1061
      %1063 = vrot.lane.b32.xlu0 %v662, 112
      %v1064 = vpop.permute.xlu0 %1063
      %1065 = vrot.lane.b32.xlu0 0.0, 112
      %v1066 = vpop.permute.xlu0 %1065
      %vm1075 = vcmask 130048
      %v1076 = vsel %vm1075, 0.0, %v892
      %v1077 = vsel %vm1075, %v833, %v894
      %v1078 = vsel %vm1075, %v834, %v896
      %v1079 = vsel %vm1075, %v835, %v898
      %v1080 = vsel %vm1075, %v836, %v900
      %v1081 = vsel %vm1075, %v837, %v902
      %v1082 = vsel %vm1075, %v838, %v904
      %v1083 = vsel %vm1075, %v839, %v906
      %vm1084 = vcmask 261120
      %v1085 = vsel %vm1084, %v1076, %v923
      %v1086 = vsel %vm1084, %v1077, %v925
      %v1087 = vsel %vm1084, %v1078, %v927
      %v1088 = vsel %vm1084, %v1079, %v929
      %v1089 = vsel %vm1084, %v1080, %v931
      %v1090 = vsel %vm1084, %v1081, %v933
      %v1091 = vsel %vm1084, %v1082, %v935
      %v1092 = vsel %vm1084, %v1083, %v937
      %vm1093 = vcmask 392192
      %v1094 = vsel %vm1093, %v1085, %v955
      %v1095 = vsel %vm1093, %v1086, %v957
      %v1096 = vsel %vm1093, %v1087, %v959
      %v1097 = vsel %vm1093, %v1088, %v961
      %v1098 = vsel %vm1093, %v1089, %v963
      %v1099 = vsel %vm1093, %v1090, %v965
      %v1100 = vsel %vm1093, %v1091, %v967
      %v1101 = vsel %vm1093, %v1092, %v969
      %vm1102 = vcmask 523264
      %v1103 = vsel %vm1102, %v1094, %v979
      %v1104 = vsel %vm1102, %v1095, %v981
      %v1105 = vsel %vm1102, %v1096, %v983
      %v1106 = vsel %vm1102, %v1097, %v985
      %v1107 = vsel %vm1102, %v1098, %v987
      %v1108 = vsel %vm1102, %v1099, %v989
      %v1109 = vsel %vm1102, %v1100, %v991
      %v1110 = vsel %vm1102, %v1101, %v993
      %vm1111 = vcmask 654336
      %v1112 = vsel %vm1111, %v1103, %v1004
      %v1113 = vsel %vm1111, %v1104, %v1006
      %v1114 = vsel %vm1111, %v1105, %v1008
      %v1115 = vsel %vm1111, %v1106, %v1010
      %v1116 = vsel %vm1111, %v1107, %v1012
      %v1117 = vsel %vm1111, %v1108, %v1014
      %v1118 = vsel %vm1111, %v1109, %v1016
      %v1119 = vsel %vm1111, %v1110, %v1018
      %vm1120 = vcmask 785408
      %v1121 = vsel %vm1120, %v1112, %v1028
      %v1122 = vsel %vm1120, %v1113, %v1030
      %v1123 = vsel %vm1120, %v1114, %v1032
      %v1124 = vsel %vm1120, %v1115, %v1034
      %v1125 = vsel %vm1120, %v1116, %v1036
      %v1126 = vsel %vm1120, %v1117, %v1038
      %v1127 = vsel %vm1120, %v1118, %v1040
      %v1128 = vsel %vm1120, %v1119, %v1042
      %vm1129 = vcmask 916480
      %v1130 = vsel %vm1129, %v1121, %v1052
      %v1131 = vsel %vm1129, %v1122, %v1054
      %v1132 = vsel %vm1129, %v1123, %v1056
      %v1133 = vsel %vm1129, %v1124, %v1058
      %v1134 = vsel %vm1129, %v1125, %v1060
      %v1135 = vsel %vm1129, %v1126, %v1062
      %v1136 = vsel %vm1129, %v1127, %v1064
      %v1137 = vsel %vm1129, %v1128, %v1066
      %v1139 = vlaneseq
      %v1140 = vshrl.u32 %v1139, 7
      %v1141 = vsub.s32 0, %v1140
      %v1142 = vrot.slane %v571, %v1141
      %v1144 = vsel %vm1075, %v883, 0
      %v1146 = vsel %vm1075, %v884, 0
      %v1148 = vsel %vm1075, %v885, 0
      %v1150 = vsel %vm1075, %v886, 0
      %v1152 = vsel %vm1075, %v887, 0
      %v1154 = vsel %vm1075, %v888, 0
      %v1156 = vsel %vm1075, %v889, 0
      %v1158 = vsel %vm1075, 0.0, 0
      %1160 = vmatprep.subr.mxu0 0.0
      %1161 = vmatpush1.msra.mxu0 %v553
      %1162 = vmatprep.subr.mxu0 0.0
      %1163 = vmatpush1.msra.mxu0 %v554
      %1164 = vmatprep.subr.mxu0 0.0
      %1165 = vmatpush1.msra.mxu0 %v555
      %1166 = vmatprep.subr.mxu0 0.0
      %1167 = vmatpush1.msra.mxu0 %v556
      %1168 = vmatprep.subr.mxu0 0.0
      %1169 = vmatpush1.msra.mxu0 %v557
      %1170 = vmatprep.subr.mxu0 0.0
      %1171 = vmatpush1.msra.mxu0 %v558
      %1172 = vmatprep.subr.mxu0 0.0
      %1173 = vmatpush1.msra.mxu0 %v559
      %1174 = vmatprep.subr.mxu0 0.0
      %1175 = vmatpush1.msra.mxu0 %v560
      %1176 = vmatprep.subr.mxu0 0.0
      %1177 = vmatpush1.msra.mxu0 %v561
      %1178 = vmatprep.subr.mxu0 0.0
      %1179 = vmatpush1.msra.mxu0 %v562
      %1180 = vmatprep.subr.mxu0 0.0
      %1181 = vmatpush1.msra.mxu0 %v563
      %1182 = vmatprep.subr.mxu0 0.0
      %1183 = vmatpush1.msra.mxu0 %v564
      %1184 = vmatprep.subr.mxu0 0.0
      %1185 = vmatpush1.msra.mxu0 %v565
      %1186 = vmatprep.subr.mxu0 0.0
      %1187 = vmatpush1.msra.mxu0 %v566
      %1188 = vmatprep.subr.mxu0 0.0
      %1189 = vmatpush1.msra.mxu0 %v567
      %1190 = vmatprep.subr.mxu0 0.0
      %1191 = vmatpush1.msra.mxu0 %v568
      %1192 = vmatprep.subr.mxu0 0.0
      %1193 = vmatpush1.msra.mxu0 %v569
      %1194 = vmatprep.subr.mxu0 0.0
      %1195 = vmatpush1.msra.mxu0 %v570
      %1196 = vmatprep.subr.mxu0 0.0
      %1197 = vmatpush1.msra.mxu0 0.0
      %1198 = vmatprep.subr.mxu0 0.0
      %1199 = vmatpush1.msra.mxu0 0.0
      %1200 = vmatprep.subr.mxu0 0.0
      %1201 = vmatpush1.msra.mxu0 0.0
      %1202 = vmatprep.subr.mxu0 0.0
      %1203 = vmatpush1.msra.mxu0 0.0
      %1204 = vmatprep.subr.mxu0 0.0
      %1205 = vmatpush1.msra.mxu0 0.0
      %1206 = vmatprep.subr.mxu0 0.0
      %1207 = vmatpush1.msra.mxu0 0.0
      %1208 = vmatprep.subr.mxu0 0.0
      %1209 = vmatpush1.msra.mxu0 0.0
      %1210 = vmatprep.subr.mxu0 0.0
      %1211 = vmatpush1.msra.mxu0 0.0
      %1212 = vmatprep.subr.mxu0 0.0
      %1213 = vmatpush1.msra.mxu0 0.0
      %1214 = vmatprep.subr.mxu0 0.0
      %1215 = vmatpush1.msra.mxu0 0.0
      %1216 = vmatprep.subr.mxu0 0.0
      %1217 = vmatpush1.msra.mxu0 0.0
      %1218 = vmatprep.subr.mxu0 0.0
      %1219 = vmatpush1.msra.mxu0 0.0
      %1220 = vmatprep.subr.mxu0 0.0
      %1221 = vmatpush1.msra.mxu0 0.0
      %1222 = vmatprep.subr.mxu0 0.0
      %1223 = vmatpush1.msra.mxu0 0.0
      %1224 = vmatprep.mubr.f32.mxu0 %v1144
      %1225 = vmatmul.mubr.f32.gmra.mrb[0].mxu0 %v1130
      %v1226 = vpop.f32.mrb[0].mxu0
      %v1227 = vadd.f32 %v1142, %v1226
      %v1228 = vpop.f32.mrb[0].mxu0
      %1229 = vmatprep.mubr.f32.mxu0 %v1146
      %1230 = vmatmul.mubr.f32.gmra.mrb[0].mxu0 %v1131
      %v1231 = vpop.f32.mrb[0].mxu0
      %v1232 = vadd.f32 %v1142, %v1231
      %v1233 = vpop.f32.mrb[0].mxu0
      %1234 = vmatprep.mubr.f32.mxu0 %v1148
      %1235 = vmatmul.mubr.f32.gmra.mrb[0].mxu0 %v1132
      %v1236 = vpop.f32.mrb[0].mxu0
      %v1237 = vadd.f32 %v1142, %v1236
      %v1238 = vpop.f32.mrb[0].mxu0
      %1239 = vmatprep.mubr.f32.mxu0 %v1150
      %1240 = vmatmul.mubr.f32.gmra.mrb[0].mxu0 %v1133
      %v1241 = vpop.f32.mrb[0].mxu0
      %v1242 = vadd.f32 %v1142, %v1241
      %v1243 = vpop.f32.mrb[0].mxu0
      %1244 = vmatprep.mubr.f32.mxu0 %v1152
      %1245 = vmatmul.mubr.f32.gmra.mrb[0].mxu0 %v1134
      %v1246 = vpop.f32.mrb[0].mxu0
      %v1247 = vadd.f32 %v1142, %v1246
      %v1248 = vpop.f32.mrb[0].mxu0
      %1249 = vmatprep.mubr.f32.mxu0 %v1154
      %1250 = vmatmul.mubr.f32.gmra.mrb[0].mxu0 %v1135
      %v1251 = vpop.f32.mrb[0].mxu0
      %v1252 = vadd.f32 %v1142, %v1251
      %v1253 = vpop.f32.mrb[0].mxu0
      %1254 = vmatprep.mubr.f32.mxu0 %v1156
      %1255 = vmatmul.mubr.f32.gmra.mrb[0].mxu0 %v1136
      %v1256 = vpop.f32.mrb[0].mxu0
      %v1257 = vadd.f32 %v1142, %v1256
      %v1258 = vpop.f32.mrb[0].mxu0
      %1259 = vmatprep.mubr.f32.mxu0 %v1158
      %1260 = vmatmul.mubr.f32.gmra.mrb[0].mxu0 %v1137
      %v1261 = vpop.f32.mrb[0].mxu0
      %v1262 = vadd.f32 %v1142, %v1261
      %v1263 = vpop.f32.mrb[0].mxu0
      %1264 = vdwg.mxu0
      %v1266 = vlaneseq
      %v1267 = vshrl.u32 %v1266, 7
      %v1268 = vsub.s32 0, %v1267
      %v1269 = vrot.slane %v572, %v1268
      %v1271 = vmul.f32 %v1227, %v1269
      %v1272 = vmul.f32 %v1232, %v1269
      %v1273 = vmul.f32 %v1237, %v1269
      %v1274 = vmul.f32 %v1242, %v1269
      %v1275 = vmul.f32 %v1247, %v1269
      %v1276 = vmul.f32 %v1252, %v1269
      %v1277 = vmul.f32 %v1257, %v1269
      %v1278 = vmul.f32 %v1262, %v1269
      %v1280 = vlaneseq
      %v1281 = vshrl.u32 %v1280, 7
      %v1282 = vsub.s32 0, %v1281
      %v1283 = vrot.slane %v573, %v1282
      %v1285 = vadd.f32 %v1271, %v1283
      %v1286 = vadd.f32 %v1272, %v1283
      %v1287 = vadd.f32 %v1273, %v1283
      %v1288 = vadd.f32 %v1274, %v1283
      %v1289 = vadd.f32 %v1275, %v1283
      %v1290 = vadd.f32 %v1276, %v1283
      %v1291 = vadd.f32 %v1277, %v1283
      %v1292 = vadd.f32 %v1278, %v1283
      %v1293 = vmax.f32 %v1285, 0.0
      %v1294 = vmax.f32 %v1286, 0.0
      %v1295 = vmax.f32 %v1287, 0.0
      %v1296 = vmax.f32 %v1288, 0.0
      %v1297 = vmax.f32 %v1289, 0.0
      %v1298 = vmax.f32 %v1290, 0.0
      %v1299 = vmax.f32 %v1291, 0.0
      %v1300 = vmax.f32 %v1292, 0.0
      %v1309 = vrot.slane %v1293, 7
      %v1310 = vrot.slane %v1294, 7
      %v1311 = vsel %vm792, %v1309, %v1310
      %v1312 = vrot.slane %v1295, 7
      %v1313 = vsel %vm792, %v1310, %v1312
      %v1314 = vrot.slane %v1296, 7
      %v1315 = vsel %vm792, %v1312, %v1314
      %v1316 = vrot.slane %v1297, 7
      %v1317 = vsel %vm792, %v1314, %v1316
      %v1318 = vrot.slane %v1298, 7
      %v1319 = vsel %vm792, %v1316, %v1318
      %v1320 = vrot.slane %v1299, 7
      %v1321 = vsel %vm792, %v1318, %v1320
      %v1322 = vrot.slane %v1300, 7
      %v1323 = vsel %vm792, %v1320, %v1322
      %v1332 = vsel %vm792, 0.0, %v1309
      %v1333 = vsel %vm825, %v1332, 0.0
      %v1334 = vsel %vm826, %v1311, 0.0
      %v1335 = vsel %vm827, %v1313, 0.0
      %v1336 = vsel %vm828, %v1315, 0.0
      %v1337 = vsel %vm829, %v1317, 0.0
      %v1338 = vsel %vm830, %v1319, 0.0
      %v1339 = vsel %vm831, %v1321, 0.0
      %v1340 = vsel %vm832, %v1323, 0.0
      %v1341 = vrot.slane %v1293, 1
      %v1342 = vrot.slane %v1294, 1
      %v1343 = vsel %vm841, %v1341, %v1342
      %v1344 = vrot.slane %v1295, 1
      %v1345 = vsel %vm841, %v1342, %v1344
      %v1346 = vrot.slane %v1296, 1
      %v1347 = vsel %vm841, %v1344, %v1346
      %v1348 = vrot.slane %v1297, 1
      %v1349 = vsel %vm841, %v1346, %v1348
      %v1350 = vrot.slane %v1298, 1
      %v1351 = vsel %vm841, %v1348, %v1350
      %v1352 = vrot.slane %v1299, 1
      %v1353 = vsel %vm841, %v1350, %v1352
      %v1354 = vrot.slane %v1300, 1
      %v1355 = vsel %vm841, %v1352, %v1354
      %v1364 = vsel %vm841, %v1354, 0.0
      %v1365 = vsel %vm874, %v1343, 0.0
      %v1366 = vsel %vm875, %v1345, 0.0
      %v1367 = vsel %vm876, %v1347, 0.0
      %v1368 = vsel %vm877, %v1349, 0.0
      %v1369 = vsel %vm878, %v1351, 0.0
      %v1370 = vsel %vm879, %v1353, 0.0
      %v1371 = vsel %vm880, %v1355, 0.0
      %v1372 = vsel %vm881, %v1364, 0.0
      %1373 = vrot.lane.b32.xlu0 %v1293, 16
      %v1374 = vpop.permute.xlu0 %1373
      %1375 = vrot.lane.b32.xlu0 %v1294, 16
      %v1376 = vpop.permute.xlu0 %1375
      %1377 = vrot.lane.b32.xlu0 %v1295, 16
      %v1378 = vpop.permute.xlu0 %1377
      %1379 = vrot.lane.b32.xlu0 %v1296, 16
      %v1380 = vpop.permute.xlu0 %1379
      %1381 = vrot.lane.b32.xlu0 %v1297, 16
      %v1382 = vpop.permute.xlu0 %1381
      %1383 = vrot.lane.b32.xlu0 %v1298, 16
      %v1384 = vpop.permute.xlu0 %1383
      %1385 = vrot.lane.b32.xlu0 %v1299, 16
      %v1386 = vpop.permute.xlu0 %1385
      %1401 = vrot.lane.b32.xlu0 %v1365, 32
      %v1402 = vpop.permute.xlu0 %1401
      %1403 = vrot.lane.b32.xlu0 %v1366, 32
      %v1404 = vpop.permute.xlu0 %1403
      %1405 = vrot.lane.b32.xlu0 %v1367, 32
      %v1406 = vpop.permute.xlu0 %1405
      %1407 = vrot.lane.b32.xlu0 %v1368, 32
      %v1408 = vpop.permute.xlu0 %1407
      %1409 = vrot.lane.b32.xlu0 %v1369, 32
      %v1410 = vpop.permute.xlu0 %1409
      %1411 = vrot.lane.b32.xlu0 %v1370, 32
      %v1412 = vpop.permute.xlu0 %1411
      %1413 = vrot.lane.b32.xlu0 %v1371, 32
      %v1414 = vpop.permute.xlu0 %1413
      %1430 = vrot.lane.b32.xlu0 %v1333, 48
      %v1431 = vpop.permute.xlu0 %1430
      %1432 = vrot.lane.b32.xlu0 %v1334, 48
      %v1433 = vpop.permute.xlu0 %1432
      %1434 = vrot.lane.b32.xlu0 %v1335, 48
      %v1435 = vpop.permute.xlu0 %1434
      %1436 = vrot.lane.b32.xlu0 %v1336, 48
      %v1437 = vpop.permute.xlu0 %1436
      %1438 = vrot.lane.b32.xlu0 %v1337, 48
      %v1439 = vpop.permute.xlu0 %1438
      %1440 = vrot.lane.b32.xlu0 %v1338, 48
      %v1441 = vpop.permute.xlu0 %1440
      %1442 = vrot.lane.b32.xlu0 %v1339, 48
      %v1443 = vpop.permute.xlu0 %1442
      %1444 = vrot.lane.b32.xlu0 %v1340, 48
      %v1445 = vpop.permute.xlu0 %1444
      %1454 = vrot.lane.b32.xlu0 %v1293, 64
      %v1455 = vpop.permute.xlu0 %1454
      %1456 = vrot.lane.b32.xlu0 %v1294, 64
      %v1457 = vpop.permute.xlu0 %1456
      %1458 = vrot.lane.b32.xlu0 %v1295, 64
      %v1459 = vpop.permute.xlu0 %1458
      %1460 = vrot.lane.b32.xlu0 %v1296, 64
      %v1461 = vpop.permute.xlu0 %1460
      %1462 = vrot.lane.b32.xlu0 %v1297, 64
      %v1463 = vpop.permute.xlu0 %1462
      %1464 = vrot.lane.b32.xlu0 %v1298, 64
      %v1465 = vpop.permute.xlu0 %1464
      %1466 = vrot.lane.b32.xlu0 %v1299, 64
      %v1467 = vpop.permute.xlu0 %1466
      %1468 = vrot.lane.b32.xlu0 %v1300, 64
      %v1469 = vpop.permute.xlu0 %1468
      %1479 = vrot.lane.b32.xlu0 %v1365, 80
      %v1480 = vpop.permute.xlu0 %1479
      %1481 = vrot.lane.b32.xlu0 %v1366, 80
      %v1482 = vpop.permute.xlu0 %1481
      %1483 = vrot.lane.b32.xlu0 %v1367, 80
      %v1484 = vpop.permute.xlu0 %1483
      %1485 = vrot.lane.b32.xlu0 %v1368, 80
      %v1486 = vpop.permute.xlu0 %1485
      %1487 = vrot.lane.b32.xlu0 %v1369, 80
      %v1488 = vpop.permute.xlu0 %1487
      %1489 = vrot.lane.b32.xlu0 %v1370, 80
      %v1490 = vpop.permute.xlu0 %1489
      %1491 = vrot.lane.b32.xlu0 %v1371, 80
      %v1492 = vpop.permute.xlu0 %1491
      %1493 = vrot.lane.b32.xlu0 %v1372, 80
      %v1494 = vpop.permute.xlu0 %1493
      %1503 = vrot.lane.b32.xlu0 %v1334, 96
      %v1504 = vpop.permute.xlu0 %1503
      %1505 = vrot.lane.b32.xlu0 %v1335, 96
      %v1506 = vpop.permute.xlu0 %1505
      %1507 = vrot.lane.b32.xlu0 %v1336, 96
      %v1508 = vpop.permute.xlu0 %1507
      %1509 = vrot.lane.b32.xlu0 %v1337, 96
      %v1510 = vpop.permute.xlu0 %1509
      %1511 = vrot.lane.b32.xlu0 %v1338, 96
      %v1512 = vpop.permute.xlu0 %1511
      %1513 = vrot.lane.b32.xlu0 %v1339, 96
      %v1514 = vpop.permute.xlu0 %1513
      %1515 = vrot.lane.b32.xlu0 %v1340, 96
      %v1516 = vpop.permute.xlu0 %1515
      %1524 = vrot.lane.b32.xlu0 %v1294, 112
      %v1525 = vpop.permute.xlu0 %1524
      %1526 = vrot.lane.b32.xlu0 %v1295, 112
      %v1527 = vpop.permute.xlu0 %1526
      %1528 = vrot.lane.b32.xlu0 %v1296, 112
      %v1529 = vpop.permute.xlu0 %1528
      %1530 = vrot.lane.b32.xlu0 %v1297, 112
      %v1531 = vpop.permute.xlu0 %1530
      %1532 = vrot.lane.b32.xlu0 %v1298, 112
      %v1533 = vpop.permute.xlu0 %1532
      %1534 = vrot.lane.b32.xlu0 %v1299, 112
      %v1535 = vpop.permute.xlu0 %1534
      %1536 = vrot.lane.b32.xlu0 %v1300, 112
      %v1537 = vpop.permute.xlu0 %1536
      %v1545 = vsel %vm1075, %v1333, %v1374
      %v1546 = vsel %vm1075, %v1334, %v1376
      %v1547 = vsel %vm1075, %v1335, %v1378
      %v1548 = vsel %vm1075, %v1336, %v1380
      %v1549 = vsel %vm1075, %v1337, %v1382
      %v1550 = vsel %vm1075, %v1338, %v1384
      %v1551 = vsel %vm1075, %v1339, %v1386
      %v1552 = vsel %vm1084, %v1545, %v1402
      %v1553 = vsel %vm1084, %v1546, %v1404
      %v1554 = vsel %vm1084, %v1547, %v1406
      %v1555 = vsel %vm1084, %v1548, %v1408
      %v1556 = vsel %vm1084, %v1549, %v1410
      %v1557 = vsel %vm1084, %v1550, %v1412
      %v1558 = vsel %vm1084, %v1551, %v1414
      %v1559 = vsel %vm1093, %v1085, %v1431
      %v1560 = vsel %vm1093, %v1552, %v1433
      %v1561 = vsel %vm1093, %v1553, %v1435
      %v1562 = vsel %vm1093, %v1554, %v1437
      %v1563 = vsel %vm1093, %v1555, %v1439
      %v1564 = vsel %vm1093, %v1556, %v1441
      %v1565 = vsel %vm1093, %v1557, %v1443
      %v1566 = vsel %vm1093, %v1558, %v1445
      %v1567 = vsel %vm1102, %v1559, %v1455
      %v1568 = vsel %vm1102, %v1560, %v1457
      %v1569 = vsel %vm1102, %v1561, %v1459
      %v1570 = vsel %vm1102, %v1562, %v1461
      %v1571 = vsel %vm1102, %v1563, %v1463
      %v1572 = vsel %vm1102, %v1564, %v1465
      %v1573 = vsel %vm1102, %v1565, %v1467
      %v1574 = vsel %vm1102, %v1566, %v1469
      %v1575 = vsel %vm1111, %v1567, %v1480
      %v1576 = vsel %vm1111, %v1568, %v1482
      %v1577 = vsel %vm1111, %v1569, %v1484
      %v1578 = vsel %vm1111, %v1570, %v1486
      %v1579 = vsel %vm1111, %v1571, %v1488
      %v1580 = vsel %vm1111, %v1572, %v1490
      %v1581 = vsel %vm1111, %v1573, %v1492
      %v1582 = vsel %vm1111, %v1574, %v1494
      %v1583 = vsel %vm1120, %v1575, %v1504
      %v1584 = vsel %vm1120, %v1576, %v1506
      %v1585 = vsel %vm1120, %v1577, %v1508
      %v1586 = vsel %vm1120, %v1578, %v1510
      %v1587 = vsel %vm1120, %v1579, %v1512
      %v1588 = vsel %vm1120, %v1580, %v1514
      %v1589 = vsel %vm1120, %v1581, %v1516
      %v1590 = vsel %vm1120, %v1582, %v1042
      %v1591 = vsel %vm1129, %v1583, %v1525
      %v1592 = vsel %vm1129, %v1584, %v1527
      %v1593 = vsel %vm1129, %v1585, %v1529
      %v1594 = vsel %vm1129, %v1586, %v1531
      %v1595 = vsel %vm1129, %v1587, %v1533
      %v1596 = vsel %vm1129, %v1588, %v1535
      %v1597 = vsel %vm1129, %v1589, %v1537
      %v1598 = vsel %vm1129, %v1590, %v1066
      %v1600 = vlaneseq
      %v1601 = vshrl.u32 %v1600, 7
      %v1602 = vsub.s32 0, %v1601
      %v1603 = vrot.slane %v592, %v1602
      %v1605 = vsel %vm1075, %v1366, 0
      %v1607 = vsel %vm1075, %v1367, 0
      %v1609 = vsel %vm1075, %v1368, 0
      %v1611 = vsel %vm1075, %v1369, 0
      %v1613 = vsel %vm1075, %v1370, 0
      %v1615 = vsel %vm1075, %v1371, 0
      %v1617 = vsel %vm1075, %v1372, 0
      %1619 = vmatprep.subr.mxu0 0.0
      %1620 = vmatpush1.msra.mxu0 %v574
      %1621 = vmatprep.subr.mxu0 0.0
      %1622 = vmatpush1.msra.mxu0 %v575
      %1623 = vmatprep.subr.mxu0 0.0
      %1624 = vmatpush1.msra.mxu0 %v576
      %1625 = vmatprep.subr.mxu0 0.0
      %1626 = vmatpush1.msra.mxu0 %v577
      %1627 = vmatprep.subr.mxu0 0.0
      %1628 = vmatpush1.msra.mxu0 %v578
      %1629 = vmatprep.subr.mxu0 0.0
      %1630 = vmatpush1.msra.mxu0 %v579
      %1631 = vmatprep.subr.mxu0 0.0
      %1632 = vmatpush1.msra.mxu0 %v580
      %1633 = vmatprep.subr.mxu0 0.0
      %1634 = vmatpush1.msra.mxu0 %v581
      %1635 = vmatprep.subr.mxu0 0.0
      %1636 = vmatpush1.msra.mxu0 %v582
      %1637 = vmatprep.subr.mxu0 0.0
      %1638 = vmatpush1.msra.mxu0 %v583
      %1639 = vmatprep.subr.mxu0 0.0
      %1640 = vmatpush1.msra.mxu0 %v584
      %1641 = vmatprep.subr.mxu0 0.0
      %1642 = vmatpush1.msra.mxu0 %v585
      %1643 = vmatprep.subr.mxu0 0.0
      %1644 = vmatpush1.msra.mxu0 %v586
      %1645 = vmatprep.subr.mxu0 0.0
      %1646 = vmatpush1.msra.mxu0 %v587
      %1647 = vmatprep.subr.mxu0 0.0
      %1648 = vmatpush1.msra.mxu0 %v588
      %1649 = vmatprep.subr.mxu0 0.0
      %1650 = vmatpush1.msra.mxu0 %v589
      %1651 = vmatprep.subr.mxu0 0.0
      %1652 = vmatpush1.msra.mxu0 %v590
      %1653 = vmatprep.subr.mxu0 0.0
      %1654 = vmatpush1.msra.mxu0 %v591
      %1655 = vmatprep.subr.mxu0 0.0
      %1656 = vmatpush1.msra.mxu0 0.0
      %1657 = vmatprep.subr.mxu0 0.0
      %1658 = vmatpush1.msra.mxu0 0.0
      %1659 = vmatprep.subr.mxu0 0.0
      %1660 = vmatpush1.msra.mxu0 0.0
      %1661 = vmatprep.subr.mxu0 0.0
      %1662 = vmatpush1.msra.mxu0 0.0
      %1663 = vmatprep.subr.mxu0 0.0
      %1664 = vmatpush1.msra.mxu0 0.0
      %1665 = vmatprep.subr.mxu0 0.0
      %1666 = vmatpush1.msra.mxu0 0.0
      %1667 = vmatprep.subr.mxu0 0.0
      %1668 = vmatpush1.msra.mxu0 0.0
      %1669 = vmatprep.subr.mxu0 0.0
      %1670 = vmatpush1.msra.mxu0 0.0
      %1671 = vmatprep.subr.mxu0 0.0
      %1672 = vmatpush1.msra.mxu0 0.0
      %1673 = vmatprep.subr.mxu0 0.0
      %1674 = vmatpush1.msra.mxu0 0.0
      %1675 = vmatprep.subr.mxu0 0.0
      %1676 = vmatpush1.msra.mxu0 0.0
      %1677 = vmatprep.subr.mxu0 0.0
      %1678 = vmatpush1.msra.mxu0 0.0
      %1679 = vmatprep.subr.mxu0 0.0
      %1680 = vmatpush1.msra.mxu0 0.0
      %1681 = vmatprep.subr.mxu0 0.0
      %1682 = vmatpush1.msra.mxu0 0.0
      %1683 = vmatprep.mubr.f32.mxu0 %v1605
      %1684 = vmatmul.mubr.f32.gmra.mrb[0].mxu0 %v1591
      %v1685 = vpop.f32.mrb[0].mxu0
      %v1686 = vadd.f32 %v1603, %v1685
      %v1687 = vpop.f32.mrb[0].mxu0
      %1688 = vmatprep.mubr.f32.mxu0 %v1607
      %1689 = vmatmul.mubr.f32.gmra.mrb[0].mxu0 %v1592
      %v1690 = vpop.f32.mrb[0].mxu0
      %v1691 = vadd.f32 %v1603, %v1690
      %v1692 = vpop.f32.mrb[0].mxu0
      %1693 = vmatprep.mubr.f32.mxu0 %v1609
      %1694 = vmatmul.mubr.f32.gmra.mrb[0].mxu0 %v1593
      %v1695 = vpop.f32.mrb[0].mxu0
      %v1696 = vadd.f32 %v1603, %v1695
      %v1697 = vpop.f32.mrb[0].mxu0
      %1698 = vmatprep.mubr.f32.mxu0 %v1611
      %1699 = vmatmul.mubr.f32.gmra.mrb[0].mxu0 %v1594
      %v1700 = vpop.f32.mrb[0].mxu0
      %v1701 = vadd.f32 %v1603, %v1700
      %v1702 = vpop.f32.mrb[0].mxu0
      %1703 = vmatprep.mubr.f32.mxu0 %v1613
      %1704 = vmatmul.mubr.f32.gmra.mrb[0].mxu0 %v1595
      %v1705 = vpop.f32.mrb[0].mxu0
      %v1706 = vadd.f32 %v1603, %v1705
      %v1707 = vpop.f32.mrb[0].mxu0
      %1708 = vmatprep.mubr.f32.mxu0 %v1615
      %1709 = vmatmul.mubr.f32.gmra.mrb[0].mxu0 %v1596
      %v1710 = vpop.f32.mrb[0].mxu0
      %v1711 = vadd.f32 %v1603, %v1710
      %v1712 = vpop.f32.mrb[0].mxu0
      %1713 = vmatprep.mubr.f32.mxu0 %v1617
      %1714 = vmatmul.mubr.f32.gmra.mrb[0].mxu0 %v1597
      %v1715 = vpop.f32.mrb[0].mxu0
      %v1716 = vadd.f32 %v1603, %v1715
      %v1717 = vpop.f32.mrb[0].mxu0
      %1718 = vmatprep.mubr.f32.mxu0 %v1158
      %1719 = vmatmul.mubr.f32.gmra.mrb[0].mxu0 %v1598
      %v1720 = vpop.f32.mrb[0].mxu0
      %v1721 = vadd.f32 %v1603, %v1720
      %v1722 = vpop.f32.mrb[0].mxu0
      %1723 = vdwg.mxu0
      %v1725 = vlaneseq
      %v1726 = vshrl.u32 %v1725, 7
      %v1727 = vsub.s32 0, %v1726
      %v1728 = vrot.slane %v593, %v1727
      %v1730 = vmul.f32 %v1686, %v1728
      %v1731 = vmul.f32 %v1691, %v1728
      %v1732 = vmul.f32 %v1696, %v1728
      %v1733 = vmul.f32 %v1701, %v1728
      %v1734 = vmul.f32 %v1706, %v1728
      %v1735 = vmul.f32 %v1711, %v1728
      %v1736 = vmul.f32 %v1716, %v1728
      %v1737 = vmul.f32 %v1721, %v1728
      %v1739 = vlaneseq
      %v1740 = vshrl.u32 %v1739, 7
      %v1741 = vsub.s32 0, %v1740
      %v1742 = vrot.slane %v594, %v1741
      %v1744 = vadd.f32 %v1730, %v1742
      %v1745 = vadd.f32 %v1731, %v1742
      %v1746 = vadd.f32 %v1732, %v1742
      %v1747 = vadd.f32 %v1733, %v1742
      %v1748 = vadd.f32 %v1734, %v1742
      %v1749 = vadd.f32 %v1735, %v1742
      %v1750 = vadd.f32 %v1736, %v1742
      %v1751 = vadd.f32 %v1737, %v1742
      %v1752 = vmax.f32 %v1744, 0.0
      %v1753 = vmax.f32 %v1745, 0.0
      %v1754 = vmax.f32 %v1746, 0.0
      %v1755 = vmax.f32 %v1747, 0.0
      %v1756 = vmax.f32 %v1748, 0.0
      %v1757 = vmax.f32 %v1749, 0.0
      %v1758 = vmax.f32 %v1750, 0.0
      %v1759 = vmax.f32 %v1751, 0.0
      %v1760 = vadd.f32 %v655, %v1752
      %v1761 = vadd.f32 %v656, %v1753
      %v1762 = vadd.f32 %v657, %v1754
      %v1763 = vadd.f32 %v658, %v1755
      %v1764 = vadd.f32 %v659, %v1756
      %v1765 = vadd.f32 %v660, %v1757
      %v1766 = vadd.f32 %v661, %v1758
      %v1767 = vadd.f32 %v662, %v1759
      %v1768 = vsel %vm1075, %v1760, 0.0
      %v1769 = vsel %vm1075, %v1761, 0.0
      %v1770 = vadd.f32 %v1768, %v1769
      %v1771 = vsel %vm1075, %v1762, 0.0
      %v1772 = vadd.f32 %v1770, %v1771
      %v1773 = vsel %vm1075, %v1763, 0.0
      %v1774 = vadd.f32 %v1772, %v1773
      %v1775 = vsel %vm1075, %v1764, 0.0
      %v1776 = vadd.f32 %v1774, %v1775
      %v1777 = vsel %vm1075, %v1765, 0.0
      %v1778 = vadd.f32 %v1776, %v1777
      %v1779 = vsel %vm1075, %v1766, 0.0
      %v1780 = vadd.f32 %v1778, %v1779
      %v1781 = vsel %vm1075, %v1767, 0.0
      %v1782 = vadd.f32 %v1780, %v1781
      %v1783 = vrot.slane %v1782, 4
      %v1784 = vadd.f32 %v1782, %v1783
      %v1785 = vrot.slane %v1784, 2
      %v1786 = vadd.f32 %v1784, %v1785
      %v1787 = vrot.slane %v1786, 1
      %v1788 = vadd.f32 %v1786, %v1787
      %v1789 = vrcp.pop 64.0
      %v1790 = vmul.f32 %v1788, %v1789
      %v1791 = vsel %vm1075, %v655, 0.0
      %v1792 = vsel %vm1075, %v656, 0.0
      %v1793 = vadd.f32 %v1791, %v1792
      %v1794 = vsel %vm1075, %v657, 0.0
      %v1795 = vadd.f32 %v1793, %v1794
      %v1796 = vsel %vm1075, %v658, 0.0
      %v1797 = vadd.f32 %v1795, %v1796
      %v1798 = vsel %vm1075, %v659, 0.0
      %v1799 = vadd.f32 %v1797, %v1798
      %v1800 = vsel %vm1075, %v660, 0.0
      %v1801 = vadd.f32 %v1799, %v1800
      %v1802 = vsel %vm1075, %v661, 0.0
      %v1803 = vadd.f32 %v1801, %v1802
      %v1804 = vsel %vm1075, %v662, 0.0
      %v1805 = vadd.f32 %v1803, %v1804
      %v1806 = vrot.slane %v1805, 4
      %v1807 = vadd.f32 %v1805, %v1806
      %v1808 = vrot.slane %v1807, 2
      %v1809 = vadd.f32 %v1807, %v1808
      %v1810 = vrot.slane %v1809, 1
      %v1811 = vadd.f32 %v1809, %v1810
      %v1812 = vmul.f32 %v1811, %v1789
      %1814 = vrot.lane.b32.xlu0 %v1812, 16
      %v1815 = vpop.permute.xlu0 %1814
      %v1817 = vsel %vm1075, %v1790, %v1815
      %v1819 = vsel %vm1084, %v1817, 0
      %1821 = vmatprep.subr.mxu0 0.0
      %1822 = vmatpush1.msra.mxu0 %v595
      %1823 = vmatprep.subr.mxu0 0.0
      %1824 = vmatpush1.msra.mxu0 %v596
      %1825 = vmatprep.subr.mxu0 0.0
      %1826 = vmatpush1.msra.mxu0 %v597
      %1827 = vmatprep.subr.mxu0 0.0
      %1828 = vmatpush1.msra.mxu0 %v598
      %1829 = vmatprep.subr.mxu0 0.0
      %1830 = vmatpush1.msra.mxu0 0.0
      %1831 = vmatprep.subr.mxu0 0.0
      %1832 = vmatpush1.msra.mxu0 0.0
      %1833 = vmatprep.subr.mxu0 0.0
      %1834 = vmatpush1.msra.mxu0 0.0
      %1835 = vmatprep.subr.mxu0 0.0
      %1836 = vmatpush1.msra.mxu0 0.0
      %1837 = vmatprep.subr.mxu0 0.0
      %1838 = vmatpush1.msra.mxu0 0.0
      %1839 = vmatprep.subr.mxu0 0.0
      %1840 = vmatpush1.msra.mxu0 0.0
      %1841 = vmatprep.subr.mxu0 0.0
      %1842 = vmatpush1.msra.mxu0 0.0
      %1843 = vmatprep.subr.mxu0 0.0
      %1844 = vmatpush1.msra.mxu0 0.0
      %1845 = vmatprep.subr.mxu0 0.0
      %1846 = vmatpush1.msra.mxu0 0.0
      %1847 = vmatprep.subr.mxu0 0.0
      %1848 = vmatpush1.msra.mxu0 0.0
      %1849 = vmatprep.subr.mxu0 0.0
      %1850 = vmatpush1.msra.mxu0 0.0
      %1851 = vmatprep.subr.mxu0 0.0
      %1852 = vmatpush1.msra.mxu0 0.0
      %1853 = vmatprep.subr.mxu0 0.0
      %1854 = vmatpush1.msra.mxu0 0.0
      %1855 = vmatprep.subr.mxu0 0.0
      %1856 = vmatpush1.msra.mxu0 0.0
      %1857 = vmatprep.subr.mxu0 0.0
      %1858 = vmatpush1.msra.mxu0 0.0
      %1859 = vmatprep.subr.mxu0 0.0
      %1860 = vmatpush1.msra.mxu0 0.0
      %1861 = vmatprep.subr.mxu0 0.0
      %1862 = vmatpush1.msra.mxu0 0.0
      %1863 = vmatprep.subr.mxu0 0.0
      %1864 = vmatpush1.msra.mxu0 0.0
      %1865 = vmatprep.subr.mxu0 0.0
      %1866 = vmatpush1.msra.mxu0 0.0
      %1867 = vmatprep.subr.mxu0 0.0
      %1868 = vmatpush1.msra.mxu0 0.0
      %1869 = vmatprep.subr.mxu0 0.0
      %1870 = vmatpush1.msra.mxu0 0.0
      %1871 = vmatprep.subr.mxu0 0.0
      %1872 = vmatpush1.msra.mxu0 0.0
      %1873 = vmatprep.subr.mxu0 0.0
      %1874 = vmatpush1.msra.mxu0 0.0
      %1875 = vmatprep.subr.mxu0 0.0
      %1876 = vmatpush1.msra.mxu0 0.0
      %1877 = vmatprep.subr.mxu0 0.0
      %1878 = vmatpush1.msra.mxu0 0.0
      %1879 = vmatprep.subr.mxu0 0.0
      %1880 = vmatpush1.msra.mxu0 0.0
      %1881 = vmatprep.subr.mxu0 0.0
      %1882 = vmatpush1.msra.mxu0 0.0
      %1883 = vmatprep.subr.mxu0 0.0
      %1884 = vmatpush1.msra.mxu0 0.0
      %1885 = vmatprep.mubr.f32.mxu0 0.0
      %1886 = vmatmul.mubr.f32.gmra.mrb[0].mxu0 %v1819
      %v1887 = vpop.f32.mrb[0].mxu0
      %v1888 = vadd.f32 %v599, %v1887
      %v1889 = vpop.f32.mrb[0].mxu0
      %1890 = vdwg.mxu0
      %vm1891 = vcmask 15360
      %v1893 = vsel %vm1891, %v1888, 0
      %vm1895 = vcmask 1041408
      %v1897 = vsel %vm1895, %v600, 0
      %1899 = vmatprep.subr.mxu0 0.0
      %1900 = vmatpush1.msra.mxu0 %v1897
      %1901 = vmatprep.subr.mxu0 0.0
      %1902 = vmatpush1.msra.mxu0 0.0
      %1903 = vmatprep.subr.mxu0 0.0
      %1904 = vmatpush1.msra.mxu0 0.0
      %1905 = vmatprep.subr.mxu0 0.0
      %1906 = vmatpush1.msra.mxu0 0.0
      %1907 = vmatprep.subr.mxu0 0.0
      %1908 = vmatpush1.msra.mxu0 0.0
      %1909 = vmatprep.subr.mxu0 0.0
      %1910 = vmatpush1.msra.mxu0 0.0
      %1911 = vmatprep.subr.mxu0 0.0
      %1912 = vmatpush1.msra.mxu0 0.0
      %1913 = vmatprep.subr.mxu0 0.0
      %1914 = vmatpush1.msra.mxu0 0.0
      %1915 = vmatprep.subr.mxu0 0.0
      %1916 = vmatpush1.msra.mxu0 0.0
      %1917 = vmatprep.subr.mxu0 0.0
      %1918 = vmatpush1.msra.mxu0 0.0
      %1919 = vmatprep.subr.mxu0 0.0
      %1920 = vmatpush1.msra.mxu0 0.0
      %1921 = vmatprep.subr.mxu0 0.0
      %1922 = vmatpush1.msra.mxu0 0.0
      %1923 = vmatprep.subr.mxu0 0.0
      %1924 = vmatpush1.msra.mxu0 0.0
      %1925 = vmatprep.subr.mxu0 0.0
      %1926 = vmatpush1.msra.mxu0 0.0
      %1927 = vmatprep.subr.mxu0 0.0
      %1928 = vmatpush1.msra.mxu0 0.0
      %1929 = vmatprep.subr.mxu0 0.0
      %1930 = vmatpush1.msra.mxu0 0.0
      %1931 = vmatprep.subr.mxu0 0.0
      %1932 = vmatpush1.msra.mxu0 0.0
      %1933 = vmatprep.subr.mxu0 0.0
      %1934 = vmatpush1.msra.mxu0 0.0
      %1935 = vmatprep.subr.mxu0 0.0
      %1936 = vmatpush1.msra.mxu0 0.0
      %1937 = vmatprep.subr.mxu0 0.0
      %1938 = vmatpush1.msra.mxu0 0.0
      %1939 = vmatprep.subr.mxu0 0.0
      %1940 = vmatpush1.msra.mxu0 0.0
      %1941 = vmatprep.subr.mxu0 0.0
      %1942 = vmatpush1.msra.mxu0 0.0
      %1943 = vmatprep.subr.mxu0 0.0
      %1944 = vmatpush1.msra.mxu0 0.0
      %1945 = vmatprep.subr.mxu0 0.0
      %1946 = vmatpush1.msra.mxu0 0.0
      %1947 = vmatprep.subr.mxu0 0.0
      %1948 = vmatpush1.msra.mxu0 0.0
      %1949 = vmatprep.subr.mxu0 0.0
      %1950 = vmatpush1.msra.mxu0 0.0
      %1951 = vmatprep.subr.mxu0 0.0
      %1952 = vmatpush1.msra.mxu0 0.0
      %1953 = vmatprep.subr.mxu0 0.0
      %1954 = vmatpush1.msra.mxu0 0.0
      %1955 = vmatprep.subr.mxu0 0.0
      %1956 = vmatpush1.msra.mxu0 0.0
      %1957 = vmatprep.subr.mxu0 0.0
      %1958 = vmatpush1.msra.mxu0 0.0
      %1959 = vmatprep.subr.mxu0 0.0
      %1960 = vmatpush1.msra.mxu0 0.0
      %1961 = vmatprep.subr.mxu0 0.0
      %1962 = vmatpush1.msra.mxu0 0.0
      %1963 = vmatprep.mubr.f32.mxu0 0.0
      %1964 = vmatmul.mubr.f32.gmra.mrb[0].mxu0 %v1893
      %v1965 = vpop.f32.mrb[0].mxu0
      %v1966 = vadd.f32 %v601, %v1965
      %v1967 = vpop.f32.mrb[0].mxu0
      %1968 = vdwg.mxu0
      %v1969 = vxor.u32 %v1966, 2147483648
      %v1970 = vmul.f32 %v1969, 1.442695
      %v1971 = vpow.pop %v1970
      %v1972 = vadd.f32 %v1971, 1.0
      %v1973 = vrcp.pop %v1972
      %v1974 = vmul.f32 1.0, %v1973
      %v1975 = vxor.u32 %v1974, 2147483648
      %v1976 = vmul.f32 %v1975, 1.442695
      %v1977 = vpow.pop %v1976
      %v1978 = vadd.f32 %v1977, 1.0
      %v1979 = vrcp.pop %v1978
      %v1980 = vmul.f32 1.0, %v1979
      %v1981 = vlaneseq
      %v1982 = vshrl.u32 %v1981, 7
      %v1983 = vsub.s32 0, %v1982
      %v1984 = vrot.slane %v1980, %v1983
      %v1985 = vmul.f32 %v1984, %v1760
      %v1986 = vmul.f32 %v1984, %v1761
      %v1987 = vmul.f32 %v1984, %v1762
      %v1988 = vmul.f32 %v1984, %v1763
      %v1989 = vmul.f32 %v1984, %v1764
      %v1990 = vmul.f32 %v1984, %v1765
      %v1991 = vmul.f32 %v1984, %v1766
      %v1992 = vmul.f32 %v1984, %v1767
      %v1993 = vsub.f32 1.0, %v1980
      %v1994 = vlaneseq
      %v1995 = vshrl.u32 %v1994, 7
      %v1996 = vsub.s32 0, %v1995
      %v1997 = vrot.slane %v1993, %v1996
      %v1998 = vmul.f32 %v1997, %v655
      %v1999 = vmul.f32 %v1997, %v656
      %v2000 = vmul.f32 %v1997, %v657
      %v2001 = vmul.f32 %v1997, %v658
      %v2002 = vmul.f32 %v1997, %v659
      %v2003 = vmul.f32 %v1997, %v660
      %v2004 = vmul.f32 %v1997, %v661
      %v2005 = vmul.f32 %v1997, %v662
      %v2006 = vadd.f32 %v1985, %v1998
      %v2007 = vadd.f32 %v1986, %v1999
      %v2008 = vadd.f32 %v1987, %v2000
      %v2009 = vadd.f32 %v1988, %v2001
      %v2010 = vadd.f32 %v1989, %v2002
      %v2011 = vadd.f32 %v1990, %v2003
      %v2012 = vadd.f32 %v1991, %v2004
      %v2013 = vadd.f32 %v1992, %v2005
      %v2014 = vadd.f32 %v2006, %v1760
      %v2015 = vadd.f32 %v2007, %v1761
      %v2016 = vadd.f32 %v2008, %v1762
      %v2017 = vadd.f32 %v2009, %v1763
      %v2018 = vadd.f32 %v2010, %v1764
      %v2019 = vadd.f32 %v2011, %v1765
      %v2020 = vadd.f32 %v2012, %v1766
      %v2021 = vadd.f32 %v2013, %v1767
      %v2022 = vmax.f32 %v2014, 0.0
      %v2023 = vmax.f32 %v2015, 0.0
      %v2024 = vmax.f32 %v2016, 0.0
      %v2025 = vmax.f32 %v2017, 0.0
      %v2026 = vmax.f32 %v2018, 0.0
      %v2027 = vmax.f32 %v2019, 0.0
      %v2028 = vmax.f32 %v2020, 0.0
      %v2029 = vmax.f32 %v2021, 0.0
      %v2030 = vsel %vm1075, %v2022, 0.0
      %2031 = vadd.xlane.f32.xlu0 %v2030
      %v2032 = vpop.xlane.xlu0 %2031
      %v2033 = vsel %vm1075, %v2023, 0.0
      %2034 = vadd.xlane.f32.xlu0 %v2033
      %v2035 = vpop.xlane.xlu0 %2034
      %v2036 = vsel %vm1075, %v2024, 0.0
      %2037 = vadd.xlane.f32.xlu0 %v2036
      %v2038 = vpop.xlane.xlu0 %2037
      %v2039 = vsel %vm1075, %v2025, 0.0
      %2040 = vadd.xlane.f32.xlu0 %v2039
      %v2041 = vpop.xlane.xlu0 %2040
      %v2042 = vsel %vm1075, %v2026, 0.0
      %2043 = vadd.xlane.f32.xlu0 %v2042
      %v2044 = vpop.xlane.xlu0 %2043
      %v2045 = vsel %vm1075, %v2027, 0.0
      %2046 = vadd.xlane.f32.xlu0 %v2045
      %v2047 = vpop.xlane.xlu0 %2046
      %v2048 = vsel %vm1075, %v2028, 0.0
      %2049 = vadd.xlane.f32.xlu0 %v2048
      %v2050 = vpop.xlane.xlu0 %2049
      %v2051 = vsel %vm1075, %v2029, 0.0
      %2052 = vadd.xlane.f32.xlu0 %v2051
      %v2053 = vpop.xlane.xlu0 %2052
      %v2054 = vrcp.pop 16.0
      %v2055 = vmul.f32 %v2032, %v2054
      %v2056 = vmul.f32 %v2035, %v2054
      %v2057 = vmul.f32 %v2038, %v2054
      %v2058 = vmul.f32 %v2041, %v2054
      %v2059 = vmul.f32 %v2044, %v2054
      %v2060 = vmul.f32 %v2047, %v2054
      %v2061 = vmul.f32 %v2050, %v2054
      %v2062 = vmul.f32 %v2053, %v2054
      %v2064 = vlaneseq
      %v2065 = vshrl.u32 %v2064, 7
      %v2066 = vsub.s32 0, %v2065
      %v2067 = vrot.slane %v602, %v2066
      %v2069 = vmul.f32 %v2055, %v2067
      %v2070 = vmul.f32 %v2056, %v2067
      %v2071 = vmul.f32 %v2057, %v2067
      %v2072 = vmul.f32 %v2058, %v2067
      %v2073 = vmul.f32 %v2059, %v2067
      %v2074 = vmul.f32 %v2060, %v2067
      %v2075 = vmul.f32 %v2061, %v2067
      %v2076 = vmul.f32 %v2062, %v2067
      %v2078 = vlaneseq
      %v2079 = vshrl.u32 %v2078, 7
      %v2080 = vsub.s32 0, %v2079
      %v2081 = vrot.slane %v603, %v2080
      %v2083 = vadd.f32 %v2069, %v2081
      %v2084 = vadd.f32 %v2070, %v2081
      %v2085 = vadd.f32 %v2071, %v2081
      %v2086 = vadd.f32 %v2072, %v2081
      %v2087 = vadd.f32 %v2073, %v2081
      %v2088 = vadd.f32 %v2074, %v2081
      %v2089 = vadd.f32 %v2075, %v2081
      %v2090 = vadd.f32 %v2076, %v2081
      %v2091 = vxor.u32 %v2083, 2147483648
      %v2092 = vxor.u32 %v2084, 2147483648
      %v2093 = vxor.u32 %v2085, 2147483648
      %v2094 = vxor.u32 %v2086, 2147483648
      %v2095 = vxor.u32 %v2087, 2147483648
      %v2096 = vxor.u32 %v2088, 2147483648
      %v2097 = vxor.u32 %v2089, 2147483648
      %v2098 = vxor.u32 %v2090, 2147483648
      %v2099 = vmul.f32 %v2091, 1.442695
      %v2100 = vpow.pop %v2099
      %v2101 = vmul.f32 %v2092, 1.442695
      %v2102 = vpow.pop %v2101
      %v2103 = vmul.f32 %v2093, 1.442695
      %v2104 = vpow.pop %v2103
      %v2105 = vmul.f32 %v2094, 1.442695
      %v2106 = vpow.pop %v2105
      %v2107 = vmul.f32 %v2095, 1.442695
      %v2108 = vpow.pop %v2107
      %v2109 = vmul.f32 %v2096, 1.442695
      %v2110 = vpow.pop %v2109
      %v2111 = vmul.f32 %v2097, 1.442695
      %v2112 = vpow.pop %v2111
      %v2113 = vmul.f32 %v2098, 1.442695
      %v2114 = vpow.pop %v2113
      %v2115 = vadd.f32 %v2100, 1.0
      %v2116 = vadd.f32 %v2102, 1.0
      %v2117 = vadd.f32 %v2104, 1.0
      %v2118 = vadd.f32 %v2106, 1.0
      %v2119 = vadd.f32 %v2108, 1.0
      %v2120 = vadd.f32 %v2110, 1.0
      %v2121 = vadd.f32 %v2112, 1.0
      %v2122 = vadd.f32 %v2114, 1.0
      %v2123 = vrcp.pop %v2115
      %v2124 = vmul.f32 1.0, %v2123
      %v2125 = vrcp.pop %v2116
      %v2126 = vmul.f32 1.0, %v2125
      %v2127 = vrcp.pop %v2117
      %v2128 = vmul.f32 1.0, %v2127
      %v2129 = vrcp.pop %v2118
      %v2130 = vmul.f32 1.0, %v2129
      %v2131 = vrcp.pop %v2119
      %v2132 = vmul.f32 1.0, %v2131
      %v2133 = vrcp.pop %v2120
      %v2134 = vmul.f32 1.0, %v2133
      %v2135 = vrcp.pop %v2121
      %v2136 = vmul.f32 1.0, %v2135
      %v2137 = vrcp.pop %v2122
      %v2138 = vmul.f32 1.0, %v2137
      %2140 = vset.pattern.permute.xlu0 0
      %2141 = vperm.xlu0 %2140, %v2124
      %v2142 = vpop.permute.xlu0 %2141
      %2145 = vset.pattern.permute.xlu0 0
      %2146 = vperm.xlu0 %2145, %v2126
      %v2147 = vpop.permute.xlu0 %2146
      %2150 = vset.pattern.permute.xlu0 0
      %2151 = vperm.xlu0 %2150, %v2128
      %v2152 = vpop.permute.xlu0 %2151
      %2155 = vset.pattern.permute.xlu0 0
      %2156 = vperm.xlu0 %2155, %v2130
      %v2157 = vpop.permute.xlu0 %2156
      %2160 = vset.pattern.permute.xlu0 0
      %2161 = vperm.xlu0 %2160, %v2132
      %v2162 = vpop.permute.xlu0 %2161
      %2165 = vset.pattern.permute.xlu0 0
      %2166 = vperm.xlu0 %2165, %v2134
      %v2167 = vpop.permute.xlu0 %2166
      %2170 = vset.pattern.permute.xlu0 0
      %2171 = vperm.xlu0 %2170, %v2136
      %v2172 = vpop.permute.xlu0 %2171
      %2175 = vset.pattern.permute.xlu0 0
      %2176 = vperm.xlu0 %2175, %v2138
      %v2177 = vpop.permute.xlu0 %2176
      %v2179 = vmul.f32 %v2142, %v1760
      %v2180 = vmul.f32 %v2147, %v1761
      %v2181 = vmul.f32 %v2152, %v1762
      %v2182 = vmul.f32 %v2157, %v1763
      %v2183 = vmul.f32 %v2162, %v1764
      %v2184 = vmul.f32 %v2167, %v1765
      %v2185 = vmul.f32 %v2172, %v1766
      %v2186 = vmul.f32 %v2177, %v1767
      %v2187 = vsub.f32 1.0, %v2124
      %v2188 = vsub.f32 1.0, %v2126
      %v2189 = vsub.f32 1.0, %v2128
      %v2190 = vsub.f32 1.0, %v2130
      %v2191 = vsub.f32 1.0, %v2132
      %v2192 = vsub.f32 1.0, %v2134
      %v2193 = vsub.f32 1.0, %v2136
      %v2194 = vsub.f32 1.0, %v2138
      %2196 = vset.pattern.permute.xlu0 0
      %2197 = vperm.xlu0 %2196, %v2187
      %v2198 = vpop.permute.xlu0 %2197
      %2201 = vset.pattern.permute.xlu0 0
      %2202 = vperm.xlu0 %2201, %v2188
      %v2203 = vpop.permute.xlu0 %2202
      %2206 = vset.pattern.permute.xlu0 0
      %2207 = vperm.xlu0 %2206, %v2189
      %v2208 = vpop.permute.xlu0 %2207
      %2211 = vset.pattern.permute.xlu0 0
      %2212 = vperm.xlu0 %2211, %v2190
      %v2213 = vpop.permute.xlu0 %2212
      %2216 = vset.pattern.permute.xlu0 0
      %2217 = vperm.xlu0 %2216, %v2191
      %v2218 = vpop.permute.xlu0 %2217
      %2221 = vset.pattern.permute.xlu0 0
      %2222 = vperm.xlu0 %2221, %v2192
      %v2223 = vpop.permute.xlu0 %2222
      %2226 = vset.pattern.permute.xlu0 0
      %2227 = vperm.xlu0 %2226, %v2193
      %v2228 = vpop.permute.xlu0 %2227
      %2231 = vset.pattern.permute.xlu0 0
      %2232 = vperm.xlu0 %2231, %v2194
      %v2233 = vpop.permute.xlu0 %2232
      %v2235 = vmul.f32 %v2198, %v2006
      %v2236 = vmul.f32 %v2203, %v2007
      %v2237 = vmul.f32 %v2208, %v2008
      %v2238 = vmul.f32 %v2213, %v2009
      %v2239 = vmul.f32 %v2218, %v2010
      %v2240 = vmul.f32 %v2223, %v2011
      %v2241 = vmul.f32 %v2228, %v2012
      %v2242 = vmul.f32 %v2233, %v2013
      %v2243 = vadd.f32 %v2179, %v2235
      %v2244 = vadd.f32 %v2180, %v2236
      %v2245 = vadd.f32 %v2181, %v2237
      %v2246 = vadd.f32 %v2182, %v2238
      %v2247 = vadd.f32 %v2183, %v2239
      %v2248 = vadd.f32 %v2184, %v2240
      %v2249 = vadd.f32 %v2185, %v2241
      %v2250 = vadd.f32 %v2186, %v2242
      %v2252 = vlaneseq
      %v2253 = vshrl.u32 %v2252, 7
      %v2254 = vsub.s32 0, %v2253
      %v2255 = vrot.slane %v606, %v2254
      %v2258 = vsel %vm1075, %v2243, 0
      %v2261 = vsel %vm1075, %v2244, 0
      %v2264 = vsel %vm1075, %v2245, 0
      %v2267 = vsel %vm1075, %v2246, 0
      %v2270 = vsel %vm1075, %v2247, 0
      %v2273 = vsel %vm1075, %v2248, 0
      %v2276 = vsel %vm1075, %v2249, 0
      %v2279 = vsel %vm1075, %v2250, 0
      %2281 = vmatprep.subr.mxu0 0.0
      %2282 = vmatpush1.msra.mxu0 %v604
      %2283 = vmatprep.subr.mxu0 0.0
      %2284 = vmatpush1.msra.mxu0 %v605
      %2285 = vmatprep.subr.mxu0 0.0
      %2286 = vmatpush1.msra.mxu0 0.0
      %2287 = vmatprep.subr.mxu0 0.0
      %2288 = vmatpush1.msra.mxu0 0.0
      %2289 = vmatprep.subr.mxu0 0.0
      %2290 = vmatpush1.msra.mxu0 0.0
      %2291 = vmatprep.subr.mxu0 0.0
      %2292 = vmatpush1.msra.mxu0 0.0
      %2293 = vmatprep.subr.mxu0 0.0
      %2294 = vmatpush1.msra.mxu0 0.0
      %2295 = vmatprep.subr.mxu0 0.0
      %2296 = vmatpush1.msra.mxu0 0.0
      %2297 = vmatprep.subr.mxu0 0.0
      %2298 = vmatpush1.msra.mxu0 0.0
      %2299 = vmatprep.subr.mxu0 0.0
      %2300 = vmatpush1.msra.mxu0 0.0
      %2301 = vmatprep.subr.mxu0 0.0
      %2302 = vmatpush1.msra.mxu0 0.0
      %2303 = vmatprep.subr.mxu0 0.0
      %2304 = vmatpush1.msra.mxu0 0.0
      %2305 = vmatprep.subr.mxu0 0.0
      %2306 = vmatpush1.msra.mxu0 0.0
      %2307 = vmatprep.subr.mxu0 0.0
      %2308 = vmatpush1.msra.mxu0 0.0
      %2309 = vmatprep.subr.mxu0 0.0
      %2310 = vmatpush1.msra.mxu0 0.0
      %2311 = vmatprep.subr.mxu0 0.0
      %2312 = vmatpush1.msra.mxu0 0.0
      %2313 = vmatprep.subr.mxu0 0.0
      %2314 = vmatpush1.msra.mxu0 0.0
      %2315 = vmatprep.subr.mxu0 0.0
      %2316 = vmatpush1.msra.mxu0 0.0
      %2317 = vmatprep.subr.mxu0 0.0
      %2318 = vmatpush1.msra.mxu0 0.0
      %2319 = vmatprep.subr.mxu0 0.0
      %2320 = vmatpush1.msra.mxu0 0.0
      %2321 = vmatprep.subr.mxu0 0.0
      %2322 = vmatpush1.msra.mxu0 0.0
      %2323 = vmatprep.subr.mxu0 0.0
      %2324 = vmatpush1.msra.mxu0 0.0
      %2325 = vmatprep.subr.mxu0 0.0
      %2326 = vmatpush1.msra.mxu0 0.0
      %2327 = vmatprep.subr.mxu0 0.0
      %2328 = vmatpush1.msra.mxu0 0.0
      %2329 = vmatprep.subr.mxu0 0.0
      %2330 = vmatpush1.msra.mxu0 0.0
      %2331 = vmatprep.subr.mxu0 0.0
      %2332 = vmatpush1.msra.mxu0 0.0
      %2333 = vmatprep.subr.mxu0 0.0
      %2334 = vmatpush1.msra.mxu0 0.0
      %2335 = vmatprep.subr.mxu0 0.0
      %2336 = vmatpush1.msra.mxu0 0.0
      %2337 = vmatprep.subr.mxu0 0.0
      %2338 = vmatpush1.msra.mxu0 0.0
      %2339 = vmatprep.subr.mxu0 0.0
      %2340 = vmatpush1.msra.mxu0 0.0
      %2341 = vmatprep.subr.mxu0 0.0
      %2342 = vmatpush1.msra.mxu0 0.0
      %2343 = vmatprep.subr.mxu0 0.0
      %2344 = vmatpush1.msra.mxu0 0.0
      %2345 = vmatprep.mubr.f32.mxu0 0.0
      %2346 = vmatmul.mubr.f32.gmra.mrb[0].mxu0 %v2258
      %v2347 = vpop.f32.mrb[0].mxu0
      %v2348 = vadd.f32 %v2255, %v2347
      %v2349 = vpop.f32.mrb[0].mxu0
      %2350 = vmatprep.mubr.f32.mxu0 0.0
      %2351 = vmatmul.mubr.f32.gmra.mrb[0].mxu0 %v2261
      %v2352 = vpop.f32.mrb[0].mxu0
      %v2353 = vadd.f32 %v2255, %v2352
      %v2354 = vpop.f32.mrb[0].mxu0
      %2355 = vmatprep.mubr.f32.mxu0 0.0
      %2356 = vmatmul.mubr.f32.gmra.mrb[0].mxu0 %v2264
      %v2357 = vpop.f32.mrb[0].mxu0
      %v2358 = vadd.f32 %v2255, %v2357
      %v2359 = vpop.f32.mrb[0].mxu0
      %2360 = vmatprep.mubr.f32.mxu0 0.0
      %2361 = vmatmul.mubr.f32.gmra.mrb[0].mxu0 %v2267
      %v2362 = vpop.f32.mrb[0].mxu0
      %v2363 = vadd.f32 %v2255, %v2362
      %v2364 = vpop.f32.mrb[0].mxu0
      %2365 = vmatprep.mubr.f32.mxu0 0.0
      %2366 = vmatmul.mubr.f32.gmra.mrb[0].mxu0 %v2270
      %v2367 = vpop.f32.mrb[0].mxu0
      %v2368 = vadd.f32 %v2255, %v2367
      %v2369 = vpop.f32.mrb[0].mxu0
      %2370 = vmatprep.mubr.f32.mxu0 0.0
      %2371 = vmatmul.mubr.f32.gmra.mrb[0].mxu0 %v2273
      %v2372 = vpop.f32.mrb[0].mxu0
      %v2373 = vadd.f32 %v2255, %v2372
      %v2374 = vpop.f32.mrb[0].mxu0
      %2375 = vmatprep.mubr.f32.mxu0 0.0
      %2376 = vmatmul.mubr.f32.gmra.mrb[0].mxu0 %v2276
      %v2377 = vpop.f32.mrb[0].mxu0
      %v2378 = vadd.f32 %v2255, %v2377
      %v2379 = vpop.f32.mrb[0].mxu0
      %2380 = vmatprep.mubr.f32.mxu0 0.0
      %2381 = vmatmul.mubr.f32.gmra.mrb[0].mxu0 %v2279
      %v2382 = vpop.f32.mrb[0].mxu0
      %v2383 = vadd.f32 %v2255, %v2382
      %v2384 = vpop.f32.mrb[0].mxu0
      %2385 = vdwg.mxu0
      %2386 = vst [vmem:[%s552] sm:$0xff] %v2348
      %2387 = vst [vmem:[%s552 + $0x8] sm:$0xff] %v2353
      %2388 = vst [vmem:[%s552 + $0x10] sm:$0xff] %v2358
      %2389 = vst [vmem:[%s552 + $0x18] sm:$0xff] %v2363
      %2390 = vst [vmem:[%s552 + $0x20] sm:$0xff] %v2368
      %2391 = vst [vmem:[%s552 + $0x28] sm:$0xff] %v2373
      %2392 = vst [vmem:[%s552 + $0x30] sm:$0xff] %v2378
      %2393 = vst [vmem:[%s552 + $0x38] sm:$0xff] %v2383
      %p2394 = scmp.lt.s32.totalorder %s32, 1
      %s2395 = scalar_select %p2394, %s32, 1
      %s2396 = smul.addr %s2395, 8
      %s2397 = smul.addr %s2396, 8
      %s2398 = scalar_lea.vmem %s17, %s2397
      // Predicated region
      $region89: #{down_pallas.1} parent=87 // pred_check
        %p2399 = pneg %p412
      $region90: #{down_pallas.1} parent=87 // pred_check_branch
        %2401 = sbr.rel (%p2399) target = $region92
      $region91: #{down_pallas.1} parent=87 // pred_region
        _
      $region92: #{down_pallas.1} parent=87 // pred_fallthru
        _
    $region88: #{down_pallas.1} parent=5 // pred_fallthru
      _
    %p2402 = scmp.le.s32.totalorder 2, %s27
    // Predicated region
    $region93: #{down_pallas.1} parent=5 // pred_check
      %p2403 = pneg %p2402
    $region94: #{down_pallas.1} parent=5 // pred_check_branch
      %2405 = sbr.rel (%p2403) target = $region96
    $region95: #{down_pallas.1} parent=5 // pred_region
      %s2406 = ssub.s32 %s27, 2
      // Predicated region
      $region97: #{down_pallas.1} parent=95 // pred_check
        %p2407 = pneg %p418
      $region98: #{down_pallas.1} parent=95 // pred_check_branch
        %2409 = sbr.rel (%p2407) target = $region100
      $region99: #{down_pallas.1} parent=95 // pred_region
        %p2410 = scmp.lt.s32.totalorder %s33, 1
        %s2411 = scalar_select %p2410, %s33, 1
        %s2412 = smul.addr %s2411, 8
        %s2413 = smul.addr %s2412, 8
        %s2414 = scalar_lea.vmem %s17, %s2413
      $region100: #{down_pallas.1} parent=95 // pred_fallthru
        _
    $region96: #{down_pallas.1} parent=5 // pred_fallthru
      _
  $region6: #{down_pallas.1} parent=0 // loop_footer
    %s31 = sadd.s32 1, %s27
  $region7: #{down_pallas.1} parent=0 // loop_footer_branch
    %26 = sbr.rel target = $region3
  $region8: #{down_pallas.1} parent=0 // loop_exit
    _

</llo_original>
